<compile_context>
chip_gen: v7x
topology: tpu7x:2x2x1
jax: 0.10.0
libtpu: 0.0.40
codegen_flags: <defaults>
</compile_context>

<pallas_src>
import jax
import jax.numpy as jnp
from jax.experimental import pallas as pl
from jax.experimental.pallas import tpu as pltpu


def _bf16_activations_supported() -> bool:
    """bf16 VPU/EUP exists on v6e and later; keep activation math in f32 on v2-v5."""
    try:
        kind = jax.devices()[0].device_kind.lower()
    except Exception:
        return True
    return not any(f"v{n}" in kind for n in (2, 3, 4, 5))


def _make_logits_kernel(bf16_act: bool):
    def kernel(x_ref, w1_ref, b1_ref, w2_ref, b2_ref, o_ref):
        # ---- hidden projection: MXU matmul, bf16 operands / f32 accumulate ----
        # (w1_ref is already bf16: cast once in the wrapper, not per grid step.)
        acc = jnp.dot(
            x_ref[...].astype(jnp.bfloat16),   # no-op if caller already passes bf16 x
            w1_ref[...],
            preferred_element_type=jnp.float32,
        )                                                       # (TN, D) f32

        if bf16_act:
            # v6e/v7x: bias add + tanh in bf16 (~2x EUP throughput) and the bf16
            # result feeds the second MXU contraction directly.
            h = jnp.tanh((acc + b1_ref[...]).astype(jnp.bfloat16))
        else:
            # v5e and older: no bf16 EUP/VPU -> f32 tanh, single cast for the MXU.
            h = jnp.tanh(acc + b1_ref[...]).astype(jnp.bfloat16)

        # ---- attention logits, emitted directly in (K, TN) orientation ----
        # Contract w2 (K, D) with h (TN, D) on D: no (TN,K)->(K,TN) transpose.
        # The K-wasted MXU columns are cheap next to the (TN,L)x(L,D) matmul.
        a_kn = jax.lax.dot_general(
            w2_ref[...], h,
            dimension_numbers=(((1,), (1,)), ((), ())),
            preferred_element_type=jnp.float32,
        )                                                       # (K, TN) f32
        o_ref[...] = a_kn + b2_ref[...]

    return kernel


def _make_softmax_kernel(n_valid: int, n_pad: int):
    needs_mask = n_pad != n_valid

    def kernel(a_ref, o_ref):
        logits = a_ref[...]                                     # (K, N_pad) f32
        if needs_mask:
            # Only present when padding exists (static decision, no per-tile cost).
            col = jax.lax.broadcasted_iota(jnp.int32, logits.shape, 1)
            logits = jnp.where(col < n_valid, logits, -1e30)    # exp(-1e30) -> 0
        m = jnp.max(logits, axis=1, keepdims=True)
        e = jnp.exp(logits - m)
        denom = jnp.sum(e, axis=1, keepdims=True)
        # One reciprocal per K row (EUP) + VPU multiply instead of K*N divides.
        o_ref[...] = e * pl.reciprocal(denom, approx=False)

    return kernel


def attention2(x, w1, b1, w2_kd, b2_k1, *, tile_n=512, single_step_max=2048,
               normalize=True):
    """MIL attention head: softmax_N( W2 @ tanh(x @ W1 + b1)^T + b2 ).

    x: (N, L) f32 or bf16; w1: (L, D); b1: (1, D); w2_kd: (K, D) (PyTorch
    (out, in) layout); b2_k1: (K, 1). Returns (K, N) f32.
    """
    N, L = x.shape
    K, D = w2_kd.shape
    assert w1.shape == (L, D) and b1.shape == (1, D) and b2_k1.shape == (K, 1)
    assert tile_n % 128 == 0, "tile_n must be a multiple of 128 (lane-dense tiles)"

    # Small N: one grid step (kills per-step pipeline overhead). Large N: stream.
    n_pad128 = pl.cdiv(N, 128) * 128
    if n_pad128 <= single_step_max:
        tile_n = n_pad128
    n_pad = pl.cdiv(N, tile_n) * tile_n
    if n_pad != N:
        x = jnp.pad(x, ((0, n_pad - N), (0, 0)))

    # One-time weight casts in the wrapper (these operands are VMEM-resident in
    # the kernel; casting them per grid step would be redundant VPU repack work
    # and double their DMA/VMEM footprint).
    w1_bf16 = w1.astype(jnp.bfloat16)
    w2_bf16 = w2_kd.astype(jnp.bfloat16)
    b1_f32 = b1.astype(jnp.float32)
    b2_f32 = b2_k1.astype(jnp.float32)

    grid = (n_pad // tile_n,)
    bf16_act = _bf16_activations_supported()
    x_bytes = x.size * x.dtype.itemsize

    # ---- Pass 1: per-tile logits, fully parallel over N ----
    logits = pl.pallas_call(
        _make_logits_kernel(bf16_act),
        out_shape=jax.ShapeDtypeStruct((K, n_pad), jnp.float32),
        grid=grid,
        in_specs=[
            pl.BlockSpec((tile_n, L), lambda i: (i, 0)),   # x: streamed tiles
            pl.BlockSpec((L, D), lambda i: (0, 0)),        # w1 (bf16): resident
            pl.BlockSpec((1, D), lambda i: (0, 0)),        # b1: resident
            pl.BlockSpec((K, D), lambda i: (0, 0)),        # w2 (bf16): resident
            pl.BlockSpec((K, 1), lambda i: (0, 0)),        # b2: resident
        ],
        out_specs=pl.BlockSpec((K, tile_n), lambda i: (0, i)),  # lane-dense blocks
        compiler_params=pltpu.CompilerParams(
            dimension_semantics=("parallel",),
            vmem_limit_bytes=32 * 1024 * 1024,
        ),
        cost_estimate=pl.CostEstimate(
            flops=2 * n_pad * L * D + 2 * n_pad * D * K,
            transcendentals=n_pad * D,
            bytes_accessed=x_bytes + 2 * (L * D + K * D) + 4 * (D + K)
                           + 4 * K * n_pad,
        ),
    )(x, w1_bf16, b1_f32, w2_bf16, b2_f32)

    if not normalize:
        return logits[:, :N]

    # ---- Pass 2: tiny softmax over N (masks padded columns) ----
    # NOTE: for very large K*N this block would need its own N-tiling with a
    # two-pass (or online) max/sum; at MIL-attention sizes it is trivial.
    out = pl.pallas_call(
        _make_softmax_kernel(N, n_pad),
        out_shape=jax.ShapeDtypeStruct((K, n_pad), jnp.float32),
        grid=(1,),
        in_specs=[pl.BlockSpec((K, n_pad), lambda i: (0, 0))],
        out_specs=pl.BlockSpec((K, n_pad), lambda i: (0, 0)),
        compiler_params=pltpu.CompilerParams(
            dimension_semantics=("arbitrary",),
        ),
    )(logits)

    return out[:, :N]


def reference(x, w1, b1, w2_kd, b2_k1, normalize=True):
    h = jnp.tanh(x.astype(jnp.float32) @ w1 + b1)   # (N, D)
    logits = w2_kd @ h.T + b2_k1                    # (K, N)
    return jax.nn.softmax(logits, axis=1) if normalize else logits


if __name__ == "__main__":
    # Module defaults L=512, D=128, K=1; N=640 instances (bag of 640 embeddings).
    N, L, D, K = 640, 512, 128, 1

    key = jax.random.PRNGKey(0)
    kx, kw1, kb1, kw2, kb2 = jax.random.split(key, 5)

    x = jax.random.normal(kx, (N, L), dtype=jnp.float32)
    lim1 = 1.0 / jnp.sqrt(jnp.float32(L))
    lim2 = 1.0 / jnp.sqrt(jnp.float32(D))
    w1 = jax.random.uniform(kw1, (L, D), jnp.float32, -lim1, lim1)   # used as x @ w1
    b1 = jax.random.uniform(kb1, (1, D), jnp.float32, -lim1, lim1)
    w2 = jax.random.uniform(kw2, (K, D), jnp.float32, -lim2, lim2)   # PyTorch (out, in)
    b2 = jax.random.uniform(kb2, (K, 1), jnp.float32, -lim2, lim2)

    ref = reference(x, w1, b1, w2, b2)

    # Default path: N=640 collapses to a single 640-wide grid step (no padding).
    out = attention2(x, w1, b1, w2, b2)
    jax.block_until_ready(out)
    assert out.shape == (K, N), out.shape
    err = jnp.max(jnp.abs(out - ref))
    # bf16 MXU operands / bf16 activations (f32 accumulation) -> loosened tolerance.
    assert jnp.allclose(out, ref, atol=1e-4, rtol=2e-2), f"max abs err {err}"
    assert jnp.allclose(jnp.sum(out, axis=1), 1.0, atol=1e-4), "softmax rows must sum to 1"

    # Multi-tile path: force tile_n=256 -> 3 grid steps, last tile half-padded,
    # exercising streaming, lane-dense block stores, and the padding mask.
    out_tiled = attention2(x, w1, b1, w2, b2, tile_n=256, single_step_max=0)
    jax.block_until_ready(out_tiled)
    err_t = jnp.max(jnp.abs(out_tiled - ref))
    assert jnp.allclose(out_tiled, ref, atol=1e-4, rtol=2e-2), f"max abs err {err_t}"
    assert jnp.allclose(jnp.sum(out_tiled, axis=1), 1.0, atol=1e-4)

    print("KERNEL_OK")
</pallas_src>

<mosaic_0001>
module attributes {stable_mosaic.version = 11 : i64} {
  func.func @kernel(%arg0: i32, %arg1: memref<640x512xf32, #tpu.memory_space<vmem>>, %arg2: memref<512x128xbf16, #tpu.memory_space<vmem>>, %arg3: memref<1x128xf32, #tpu.memory_space<vmem>>, %arg4: memref<1x128xbf16, #tpu.memory_space<vmem>>, %arg5: memref<1x1xf32, #tpu.memory_space<vmem>>, %arg6: memref<1x640xf32, #tpu.memory_space<vmem>>) attributes {dimension_semantics = [#tpu.dimension_semantics<parallel>], iteration_bounds = array<i64: 1>, scalar_prefetch = 0 : i64, scratch_operands = 0 : i64, tpu.core_type = #tpu.core_type<tc>, window_params = [{transform_indices = @transform_0, window_bounds = array<i64: 640, 512>}, {pipeline_mode = #tpu.pipeline_mode<synchronous>, transform_indices = @transform_1, window_bounds = array<i64: 512, 128>}, {pipeline_mode = #tpu.pipeline_mode<synchronous>, transform_indices = @transform_2, window_bounds = array<i64: 1, 128>}, {pipeline_mode = #tpu.pipeline_mode<synchronous>, transform_indices = @transform_3, window_bounds = array<i64: 1, 128>}, {pipeline_mode = #tpu.pipeline_mode<synchronous>, transform_indices = @transform_4, window_bounds = array<i64: 1, 1>}, {transform_indices = @transform_5, window_bounds = array<i64: 1, 640>}]} {
    %c0 = arith.constant 0 : index
    %c0_0 = arith.constant 0 : index
    %0 = vector.load %arg1[%c0, %c0_0] : memref<640x512xf32, #tpu.memory_space<vmem>>, vector<640x512xf32>
    %1 = arith.truncf %0 : vector<640x512xf32> to vector<640x512xbf16>
    %c0_1 = arith.constant 0 : index
    %c0_2 = arith.constant 0 : index
    %2 = vector.load %arg2[%c0_1, %c0_2] : memref<512x128xbf16, #tpu.memory_space<vmem>>, vector<512x128xbf16>
    %cst = arith.constant dense<0.000000e+00> : vector<640x128xf32>
    %3 = tpu.matmul %1, %2, %cst {dimension_numbers = #tpu.dot_dimension_numbers<[1], [0], [0], [1], [0, 0, 1, 1], [], []>} : vector<640x512xbf16>, vector<512x128xbf16>, vector<640x128xf32> -> vector<640x128xf32>
    %c0_3 = arith.constant 0 : index
    %c0_4 = arith.constant 0 : index
    %4 = vector.load %arg3[%c0_3, %c0_4] : memref<1x128xf32, #tpu.memory_space<vmem>>, vector<1x128xf32>
    %5 = vector.broadcast %4 : vector<1x128xf32> to vector<640x128xf32>
    %6 = arith.addf %3, %5 : vector<640x128xf32>
    %7 = arith.truncf %6 : vector<640x128xf32> to vector<640x128xbf16>
    %8 = math.tanh %7 : vector<640x128xbf16>
    %c0_5 = arith.constant 0 : index
    %c0_6 = arith.constant 0 : index
    %9 = vector.load %arg4[%c0_5, %c0_6] : memref<1x128xbf16, #tpu.memory_space<vmem>>, vector<1x128xbf16>
    %cst_7 = arith.constant dense<0.000000e+00> : vector<1x640xf32>
    %10 = tpu.matmul %9, %8, %cst_7 {dimension_numbers = #tpu.dot_dimension_numbers<[1], [1], [0], [0], [0, 0, 1, 0], [], []>} : vector<1x128xbf16>, vector<640x128xbf16>, vector<1x640xf32> -> vector<1x640xf32>
    %c0_8 = arith.constant 0 : index
    %c0_9 = arith.constant 0 : index
    %11 = vector.load %arg5[%c0_8, %c0_9] : memref<1x1xf32, #tpu.memory_space<vmem>>, vector<1x1xf32>
    %12 = vector.broadcast %11 : vector<1x1xf32> to vector<1x640xf32>
    %13 = arith.addf %10, %12 : vector<1x640xf32>
    %c0_10 = arith.constant 0 : index
    %c0_11 = arith.constant 0 : index
    %14 = vector.load %arg6[%c0_10, %c0_11] : memref<1x640xf32, #tpu.memory_space<vmem>>, vector<1x640xf32>
    tpu.vector_store %arg6[%c0_10, %c0_11], %13 {strides = array<i32>} : memref<1x640xf32, #tpu.memory_space<vmem>>, vector<1x640xf32>,
    return
  }
  func.func @transform_0(%arg0: i32) -> (i32, i32) {
    %c0_i32 = arith.constant 0 : i32
    %c0_i32_0 = arith.constant 0 : i32
    return %arg0, %c0_i32 : i32, i32
  }
  func.func @transform_1(%arg0: i32) -> (i32, i32) {
    %c0_i32 = arith.constant 0 : i32
    %c0_i32_0 = arith.constant 0 : i32
    %c0_i32_1 = arith.constant 0 : i32
    return %c0_i32, %c0_i32_0 : i32, i32
  }
  func.func @transform_2(%arg0: i32) -> (i32, i32) {
    %c0_i32 = arith.constant 0 : i32
    %c0_i32_0 = arith.constant 0 : i32
    %c0_i32_1 = arith.constant 0 : i32
    return %c0_i32, %c0_i32_0 : i32, i32
  }
  func.func @transform_3(%arg0: i32) -> (i32, i32) {
    %c0_i32 = arith.constant 0 : i32
    %c0_i32_0 = arith.constant 0 : i32
    %c0_i32_1 = arith.constant 0 : i32
    return %c0_i32, %c0_i32_0 : i32, i32
  }
  func.func @transform_4(%arg0: i32) -> (i32, i32) {
    %c0_i32 = arith.constant 0 : i32
    %c0_i32_0 = arith.constant 0 : i32
    %c0_i32_1 = arith.constant 0 : i32
    return %c0_i32, %c0_i32_0 : i32, i32
  }
  func.func @transform_5(%arg0: i32) -> (i32, i32) {
    %c0_i32 = arith.constant 0 : i32
    %c0_i32_0 = arith.constant 0 : i32
    return %c0_i32, %arg0 : i32, i32
  }
}

</mosaic_0001>

<llo_original>
// kernel: tpu_custom_call.1
$region0: #{tpu_custom_call.1}
  #allocation0 [shape = 'u32[]', space=smem, size = 0x4, offset = 0x4, fixed_abs, tag = 'smem constant byte address 0x4 - core index']
  #allocation1 [shape = 'u32[144,128]{1,0:T(1,128)}', space=vmem, size = 0x12000, scoped, tag = 'internal scratch']
  #allocation2 [shape = 'f32[1,1]{1,0:T(1,128)S(1)}', space=vmem, size = 0x200, scoped, tag = 'scoped memory for tpu_custom_call.1']
  %s0 = inlined_call_operand.hbm [shape: f32[640,512], index: 0, kind: input, shape index: {}]
  %s1 = inlined_call_operand.hbm [shape: bf16[512,128], index: 1, kind: input, shape index: {}]
  %s2 = inlined_call_operand.hbm [shape: f32[1,128], index: 2, kind: input, shape index: {}]
  %s3 = inlined_call_operand.hbm [shape: bf16[1,128], index: 3, kind: input, shape index: {}]
  %s4 = inlined_call_operand.<no memory space> [shape: f32[1,1], index: 4, kind: input, shape index: {}]
  %s5 = inlined_call_operand.hbm [shape: f32[1,640], index: 5, kind: output, shape index: {}]
  %s6 = sld [smem:[#allocation0]]
  $region46: #{tpu_custom_call.1} parent=0
    _
  %s8 = ssub.s32 1, %s6
  %s9 = scalar_select 0, %s8, %s6
  %v10 = vstv %s4
  %11 = vst [vmem:[#allocation2] sm:$0x1] %v10
  $region1: #{tpu_custom_call.1} parent=0
    #allocation3 [shape = 'u8[1310720]{0}', space=vmem, size = 0x140000, scoped, tag = 'input window, operand 0, single buffered']
    #allocation4 [shape = 's32[1]{0}', space=sflag, size = 0x4, scoped, tag = 'scoped memory for tpu_custom_call.1']
    #allocation5 [shape = 's32[1]{0}', space=sflag, size = 0x4, scoped, tag = 'scoped memory for tpu_custom_call.1']
    #allocation6 [shape = 'u8[131072]{0}', space=vmem, size = 0x20000, scoped, tag = 'input window, operand 1, single buffered']
    #allocation7 [shape = 's32[1]{0}', space=sflag, size = 0x4, scoped, tag = 'scoped memory for tpu_custom_call.1']
    #allocation8 [shape = 'u8[512]{0}', space=vmem, size = 0x400, scoped, tag = 'input window, operand 2, single buffered']
    #allocation9 [shape = 'u8[512]{0}', space=vmem, size = 0x400, scoped, tag = 'input window, operand 3, single buffered']
    #allocation10 [shape = 's32[1]{0}', space=sflag, size = 0x4, scoped, tag = 'scoped memory for tpu_custom_call.1']
    #allocation11 [shape = 'u8[2560]{0}', space=vmem, size = 0xc00, scoped, tag = 'output window, operand 0, single buffered']
    %12 = vsyncpa [#allocation4], 0
    %13 = vsyncpa [#allocation7], 0
    %14 = vsyncpa [#allocation10], 0
    %15 = vsyncpa [#allocation5], 0
    // Predicated region
    $region2: #{tpu_custom_call.1} parent=1 // pred_check
      _
    $region3: #{tpu_custom_call.1} parent=1 // pred_check_branch
      %17 = sbr.rel (0) target = $region5
    $region4: #{tpu_custom_call.1} parent=1 // pred_region
      %s19 = ssub.s32 40960, 40960
      %20 = vsyncadd [#allocation4], %s19
      %s21 = sshll.u32 [#allocation3], 4
      %s22 = int_to_ptr.vmem [resolvable:$true] %s21
      %27 = dma.hbm_to_vmem [thread:$0]  %s0, 40960, %s22, [#allocation4], 512, 512, 32
    $region5: #{tpu_custom_call.1} parent=1 // pred_fallthru
      _
    // Predicated region
    $region6: #{tpu_custom_call.1} parent=1 // pred_check
      _
    $region7: #{tpu_custom_call.1} parent=1 // pred_check_branch
      %29 = sbr.rel (0) target = $region9
    $region8: #{tpu_custom_call.1} parent=1 // pred_region
      %s31 = ssub.s32 4096, 4096
      %32 = vsyncadd [#allocation7], %s31
      %s33 = sshll.u32 [#allocation6], 4
      %s34 = int_to_ptr.vmem [resolvable:$true] %s33
      %39 = dma.hbm_to_vmem [thread:$0]  %s1, 4096, %s34, [#allocation7], 64, 64, 4
    $region9: #{tpu_custom_call.1} parent=1 // pred_fallthru
      _
    // Predicated region
    $region10: #{tpu_custom_call.1} parent=1 // pred_check
      _
    $region11: #{tpu_custom_call.1} parent=1 // pred_check_branch
      %41 = sbr.rel (0) target = $region13
    $region12: #{tpu_custom_call.1} parent=1 // pred_region
      %s43 = ssub.s32 16, 16
      %44 = vsyncadd [#allocation7], %s43
      %s46 = sshll.u32 [#allocation8], 4
      %s47 = int_to_ptr.vmem [resolvable:$true] %s46
      %49 = dma.hbm_to_vmem [thread:$0]  %s2, 16, %s47, [#allocation7]
    $region13: #{tpu_custom_call.1} parent=1 // pred_fallthru
      _
    // Predicated region
    $region14: #{tpu_custom_call.1} parent=1 // pred_check
      _
    $region15: #{tpu_custom_call.1} parent=1 // pred_check_branch
      %51 = sbr.rel (0) target = $region17
    $region16: #{tpu_custom_call.1} parent=1 // pred_region
      %s53 = ssub.s32 16, 16
      %54 = vsyncadd [#allocation10], %s53
      %s56 = sshll.u32 [#allocation9], 4
      %s57 = int_to_ptr.vmem [resolvable:$true] %s56
      %59 = dma.hbm_to_vmem [thread:$0]  %s3, 16, %s57, [#allocation10]
    $region17: #{tpu_custom_call.1} parent=1 // pred_fallthru
      _
    // Predicated region
    $region18: #{tpu_custom_call.1} parent=1 // pred_check
      _
    $region19: #{tpu_custom_call.1} parent=1 // pred_check_branch
      %61 = sbr.rel (0) target = $region21
    $region20: #{tpu_custom_call.1} parent=1 // pred_region
      _
    $region21: #{tpu_custom_call.1} parent=1 // pred_fallthru
      _
    // Predicated region
    $region22: #{tpu_custom_call.1} parent=1 // pred_check
      _
    $region23: #{tpu_custom_call.1} parent=1 // pred_check_branch
      %63 = sbr.rel (0) target = $region25
    $region24: #{tpu_custom_call.1} parent=1 // pred_region
      %64 = dma.done [#allocation4], 40960
    $region25: #{tpu_custom_call.1} parent=1 // pred_fallthru
      _
    // Predicated region
    $region26: #{tpu_custom_call.1} parent=1 // pred_check
      _
    $region27: #{tpu_custom_call.1} parent=1 // pred_check_branch
      %66 = sbr.rel (0) target = $region29
    $region28: #{tpu_custom_call.1} parent=1 // pred_region
      %67 = dma.done [#allocation7], 4096
    $region29: #{tpu_custom_call.1} parent=1 // pred_fallthru
      _
    // Predicated region
    $region30: #{tpu_custom_call.1} parent=1 // pred_check
      _
    $region31: #{tpu_custom_call.1} parent=1 // pred_check_branch
      %69 = sbr.rel (0) target = $region33
    $region32: #{tpu_custom_call.1} parent=1 // pred_region
      %70 = dma.done [#allocation7], 16
    $region33: #{tpu_custom_call.1} parent=1 // pred_fallthru
      _
    // Predicated region
    $region34: #{tpu_custom_call.1} parent=1 // pred_check
      _
    $region35: #{tpu_custom_call.1} parent=1 // pred_check_branch
      %72 = sbr.rel (0) target = $region37
    $region36: #{tpu_custom_call.1} parent=1 // pred_region
      %73 = dma.done [#allocation10], 16
    $region37: #{tpu_custom_call.1} parent=1 // pred_fallthru
      _
    %v75 = vld [vmem:[#allocation3] sm:$0xff]
    %v76 = vld [vmem:[#allocation3 + $0x8] sm:$0xff]
    %v77 = vld [vmem:[#allocation3 + $0x10] sm:$0xff]
    %v78 = vld [vmem:[#allocation3 + $0x18] sm:$0xff]
    %v79 = vld [vmem:[#allocation3 + $0x20] sm:$0xff]
    %v80 = vld [vmem:[#allocation3 + $0x28] sm:$0xff]
    %v81 = vld [vmem:[#allocation3 + $0x30] sm:$0xff]
    %v82 = vld [vmem:[#allocation3 + $0x38] sm:$0xff]
    %v83 = vld [vmem:[#allocation3 + $0x40] sm:$0xff]
    %v84 = vld [vmem:[#allocation3 + $0x48] sm:$0xff]
    %v85 = vld [vmem:[#allocation3 + $0x50] sm:$0xff]
    %v86 = vld [vmem:[#allocation3 + $0x58] sm:$0xff]
    %v87 = vld [vmem:[#allocation3 + $0x60] sm:$0xff]
    %v88 = vld [vmem:[#allocation3 + $0x68] sm:$0xff]
    %v89 = vld [vmem:[#allocation3 + $0x70] sm:$0xff]
    %v90 = vld [vmem:[#allocation3 + $0x78] sm:$0xff]
    %v91 = vld [vmem:[#allocation3 + $0x80] sm:$0xff]
    %v92 = vld [vmem:[#allocation3 + $0x88] sm:$0xff]
    %v93 = vld [vmem:[#allocation3 + $0x90] sm:$0xff]
    %v94 = vld [vmem:[#allocation3 + $0x98] sm:$0xff]
    %v95 = vld [vmem:[#allocation3 + $0xa0] sm:$0xff]
    %v96 = vld [vmem:[#allocation3 + $0xa8] sm:$0xff]
    %v97 = vld [vmem:[#allocation3 + $0xb0] sm:$0xff]
    %v98 = vld [vmem:[#allocation3 + $0xb8] sm:$0xff]
    %v99 = vld [vmem:[#allocation3 + $0xc0] sm:$0xff]
    %v100 = vld [vmem:[#allocation3 + $0xc8] sm:$0xff]
    %v101 = vld [vmem:[#allocation3 + $0xd0] sm:$0xff]
    %v102 = vld [vmem:[#allocation3 + $0xd8] sm:$0xff]
    %v103 = vld [vmem:[#allocation3 + $0xe0] sm:$0xff]
    %v104 = vld [vmem:[#allocation3 + $0xe8] sm:$0xff]
    %v105 = vld [vmem:[#allocation3 + $0xf0] sm:$0xff]
    %v106 = vld [vmem:[#allocation3 + $0xf8] sm:$0xff]
    %v107 = vld [vmem:[#allocation3 + $0x100] sm:$0xff]
    %v108 = vld [vmem:[#allocation3 + $0x108] sm:$0xff]
    %v109 = vld [vmem:[#allocation3 + $0x110] sm:$0xff]
    %v110 = vld [vmem:[#allocation3 + $0x118] sm:$0xff]
    %v111 = vld [vmem:[#allocation3 + $0x120] sm:$0xff]
    %v112 = vld [vmem:[#allocation3 + $0x128] sm:$0xff]
    %v113 = vld [vmem:[#allocation3 + $0x130] sm:$0xff]
    %v114 = vld [vmem:[#allocation3 + $0x138] sm:$0xff]
    %v115 = vld [vmem:[#allocation3 + $0x140] sm:$0xff]
    %v116 = vld [vmem:[#allocation3 + $0x148] sm:$0xff]
    %v117 = vld [vmem:[#allocation3 + $0x150] sm:$0xff]
    %v118 = vld [vmem:[#allocation3 + $0x158] sm:$0xff]
    %v119 = vld [vmem:[#allocation3 + $0x160] sm:$0xff]
    %v120 = vld [vmem:[#allocation3 + $0x168] sm:$0xff]
    %v121 = vld [vmem:[#allocation3 + $0x170] sm:$0xff]
    %v122 = vld [vmem:[#allocation3 + $0x178] sm:$0xff]
    %v123 = vld [vmem:[#allocation3 + $0x180] sm:$0xff]
    %v124 = vld [vmem:[#allocation3 + $0x188] sm:$0xff]
    %v125 = vld [vmem:[#allocation3 + $0x190] sm:$0xff]
    %v126 = vld [vmem:[#allocation3 + $0x198] sm:$0xff]
    %v127 = vld [vmem:[#allocation3 + $0x1a0] sm:$0xff]
    %v128 = vld [vmem:[#allocation3 + $0x1a8] sm:$0xff]
    %v129 = vld [vmem:[#allocation3 + $0x1b0] sm:$0xff]
    %v130 = vld [vmem:[#allocation3 + $0x1b8] sm:$0xff]
    %v131 = vld [vmem:[#allocation3 + $0x1c0] sm:$0xff]
    %v132 = vld [vmem:[#allocation3 + $0x1c8] sm:$0xff]
    %v133 = vld [vmem:[#allocation3 + $0x1d0] sm:$0xff]
    %v134 = vld [vmem:[#allocation3 + $0x1d8] sm:$0xff]
    %v135 = vld [vmem:[#allocation3 + $0x1e0] sm:$0xff]
    %v136 = vld [vmem:[#allocation3 + $0x1e8] sm:$0xff]
    %v137 = vld [vmem:[#allocation3 + $0x1f0] sm:$0xff]
    %v138 = vld [vmem:[#allocation3 + $0x1f8] sm:$0xff]
    %v139 = vld [vmem:[#allocation3 + $0x200] sm:$0xff]
    %v140 = vld [vmem:[#allocation3 + $0x208] sm:$0xff]
    %v141 = vld [vmem:[#allocation3 + $0x210] sm:$0xff]
    %v142 = vld [vmem:[#allocation3 + $0x218] sm:$0xff]
    %v143 = vld [vmem:[#allocation3 + $0x220] sm:$0xff]
    %v144 = vld [vmem:[#allocation3 + $0x228] sm:$0xff]
    %v145 = vld [vmem:[#allocation3 + $0x230] sm:$0xff]
    %v146 = vld [vmem:[#allocation3 + $0x238] sm:$0xff]
    %v147 = vld [vmem:[#allocation3 + $0x240] sm:$0xff]
    %v148 = vld [vmem:[#allocation3 + $0x248] sm:$0xff]
    %v149 = vld [vmem:[#allocation3 + $0x250] sm:$0xff]
    %v150 = vld [vmem:[#allocation3 + $0x258] sm:$0xff]
    %v151 = vld [vmem:[#allocation3 + $0x260] sm:$0xff]
    %v152 = vld [vmem:[#allocation3 + $0x268] sm:$0xff]
    %v153 = vld [vmem:[#allocation3 + $0x270] sm:$0xff]
    %v154 = vld [vmem:[#allocation3 + $0x278] sm:$0xff]
    %v155 = vld [vmem:[#allocation3 + $0x280] sm:$0xff]
    %v156 = vld [vmem:[#allocation3 + $0x288] sm:$0xff]
    %v157 = vld [vmem:[#allocation3 + $0x290] sm:$0xff]
    %v158 = vld [vmem:[#allocation3 + $0x298] sm:$0xff]
    %v159 = vld [vmem:[#allocation3 + $0x2a0] sm:$0xff]
    %v160 = vld [vmem:[#allocation3 + $0x2a8] sm:$0xff]
    %v161 = vld [vmem:[#allocation3 + $0x2b0] sm:$0xff]
    %v162 = vld [vmem:[#allocation3 + $0x2b8] sm:$0xff]
    %v163 = vld [vmem:[#allocation3 + $0x2c0] sm:$0xff]
    %v164 = vld [vmem:[#allocation3 + $0x2c8] sm:$0xff]
    %v165 = vld [vmem:[#allocation3 + $0x2d0] sm:$0xff]
    %v166 = vld [vmem:[#allocation3 + $0x2d8] sm:$0xff]
    %v167 = vld [vmem:[#allocation3 + $0x2e0] sm:$0xff]
    %v168 = vld [vmem:[#allocation3 + $0x2e8] sm:$0xff]
    %v169 = vld [vmem:[#allocation3 + $0x2f0] sm:$0xff]
    %v170 = vld [vmem:[#allocation3 + $0x2f8] sm:$0xff]
    %v171 = vld [vmem:[#allocation3 + $0x300] sm:$0xff]
    %v172 = vld [vmem:[#allocation3 + $0x308] sm:$0xff]
    %v173 = vld [vmem:[#allocation3 + $0x310] sm:$0xff]
    %v174 = vld [vmem:[#allocation3 + $0x318] sm:$0xff]
    %v175 = vld [vmem:[#allocation3 + $0x320] sm:$0xff]
    %v176 = vld [vmem:[#allocation3 + $0x328] sm:$0xff]
    %v177 = vld [vmem:[#allocation3 + $0x330] sm:$0xff]
    %v178 = vld [vmem:[#allocation3 + $0x338] sm:$0xff]
    %v179 = vld [vmem:[#allocation3 + $0x340] sm:$0xff]
    %v180 = vld [vmem:[#allocation3 + $0x348] sm:$0xff]
    %v181 = vld [vmem:[#allocation3 + $0x350] sm:$0xff]
    %v182 = vld [vmem:[#allocation3 + $0x358] sm:$0xff]
    %v183 = vld [vmem:[#allocation3 + $0x360] sm:$0xff]
    %v184 = vld [vmem:[#allocation3 + $0x368] sm:$0xff]
    %v185 = vld [vmem:[#allocation3 + $0x370] sm:$0xff]
    %v186 = vld [vmem:[#allocation3 + $0x378] sm:$0xff]
    %v187 = vld [vmem:[#allocation3 + $0x380] sm:$0xff]
    %v188 = vld [vmem:[#allocation3 + $0x388] sm:$0xff]
    %v189 = vld [vmem:[#allocation3 + $0x390] sm:$0xff]
    %v190 = vld [vmem:[#allocation3 + $0x398] sm:$0xff]
    %v191 = vld [vmem:[#allocation3 + $0x3a0] sm:$0xff]
    %v192 = vld [vmem:[#allocation3 + $0x3a8] sm:$0xff]
    %v193 = vld [vmem:[#allocation3 + $0x3b0] sm:$0xff]
    %v194 = vld [vmem:[#allocation3 + $0x3b8] sm:$0xff]
    %v195 = vld [vmem:[#allocation3 + $0x3c0] sm:$0xff]
    %v196 = vld [vmem:[#allocation3 + $0x3c8] sm:$0xff]
    %v197 = vld [vmem:[#allocation3 + $0x3d0] sm:$0xff]
    %v198 = vld [vmem:[#allocation3 + $0x3d8] sm:$0xff]
    %v199 = vld [vmem:[#allocation3 + $0x3e0] sm:$0xff]
    %v200 = vld [vmem:[#allocation3 + $0x3e8] sm:$0xff]
    %v201 = vld [vmem:[#allocation3 + $0x3f0] sm:$0xff]
    %v202 = vld [vmem:[#allocation3 + $0x3f8] sm:$0xff]
    %v203 = vld [vmem:[#allocation3 + $0x400] sm:$0xff]
    %v204 = vld [vmem:[#allocation3 + $0x408] sm:$0xff]
    %v205 = vld [vmem:[#allocation3 + $0x410] sm:$0xff]
    %v206 = vld [vmem:[#allocation3 + $0x418] sm:$0xff]
    %v207 = vld [vmem:[#allocation3 + $0x420] sm:$0xff]
    %v208 = vld [vmem:[#allocation3 + $0x428] sm:$0xff]
    %v209 = vld [vmem:[#allocation3 + $0x430] sm:$0xff]
    %v210 = vld [vmem:[#allocation3 + $0x438] sm:$0xff]
    %v211 = vld [vmem:[#allocation3 + $0x440] sm:$0xff]
    %v212 = vld [vmem:[#allocation3 + $0x448] sm:$0xff]
    %v213 = vld [vmem:[#allocation3 + $0x450] sm:$0xff]
    %v214 = vld [vmem:[#allocation3 + $0x458] sm:$0xff]
    %v215 = vld [vmem:[#allocation3 + $0x460] sm:$0xff]
    %v216 = vld [vmem:[#allocation3 + $0x468] sm:$0xff]
    %v217 = vld [vmem:[#allocation3 + $0x470] sm:$0xff]
    %v218 = vld [vmem:[#allocation3 + $0x478] sm:$0xff]
    %v219 = vld [vmem:[#allocation3 + $0x480] sm:$0xff]
    %v220 = vld [vmem:[#allocation3 + $0x488] sm:$0xff]
    %v221 = vld [vmem:[#allocation3 + $0x490] sm:$0xff]
    %v222 = vld [vmem:[#allocation3 + $0x498] sm:$0xff]
    %v223 = vld [vmem:[#allocation3 + $0x4a0] sm:$0xff]
    %v224 = vld [vmem:[#allocation3 + $0x4a8] sm:$0xff]
    %v225 = vld [vmem:[#allocation3 + $0x4b0] sm:$0xff]
    %v226 = vld [vmem:[#allocation3 + $0x4b8] sm:$0xff]
    %v227 = vld [vmem:[#allocation3 + $0x4c0] sm:$0xff]
    %v228 = vld [vmem:[#allocation3 + $0x4c8] sm:$0xff]
    %v229 = vld [vmem:[#allocation3 + $0x4d0] sm:$0xff]
    %v230 = vld [vmem:[#allocation3 + $0x4d8] sm:$0xff]
    %v231 = vld [vmem:[#allocation3 + $0x4e0] sm:$0xff]
    %v232 = vld [vmem:[#allocation3 + $0x4e8] sm:$0xff]
    %v233 = vld [vmem:[#allocation3 + $0x4f0] sm:$0xff]
    %v234 = vld [vmem:[#allocation3 + $0x4f8] sm:$0xff]
    %v235 = vld [vmem:[#allocation3 + $0x500] sm:$0xff]
    %v236 = vld [vmem:[#allocation3 + $0x508] sm:$0xff]
    %v237 = vld [vmem:[#allocation3 + $0x510] sm:$0xff]
    %v238 = vld [vmem:[#allocation3 + $0x518] sm:$0xff]
    %v239 = vld [vmem:[#allocation3 + $0x520] sm:$0xff]
    %v240 = vld [vmem:[#allocation3 + $0x528] sm:$0xff]
    %v241 = vld [vmem:[#allocation3 + $0x530] sm:$0xff]
    %v242 = vld [vmem:[#allocation3 + $0x538] sm:$0xff]
    %v243 = vld [vmem:[#allocation3 + $0x540] sm:$0xff]
    %v244 = vld [vmem:[#allocation3 + $0x548] sm:$0xff]
    %v245 = vld [vmem:[#allocation3 + $0x550] sm:$0xff]
    %v246 = vld [vmem:[#allocation3 + $0x558] sm:$0xff]
    %v247 = vld [vmem:[#allocation3 + $0x560] sm:$0xff]
    %v248 = vld [vmem:[#allocation3 + $0x568] sm:$0xff]
    %v249 = vld [vmem:[#allocation3 + $0x570] sm:$0xff]
    %v250 = vld [vmem:[#allocation3 + $0x578] sm:$0xff]
    %v251 = vld [vmem:[#allocation3 + $0x580] sm:$0xff]
    %v252 = vld [vmem:[#allocation3 + $0x588] sm:$0xff]
    %v253 = vld [vmem:[#allocation3 + $0x590] sm:$0xff]
    %v254 = vld [vmem:[#allocation3 + $0x598] sm:$0xff]
    %v255 = vld [vmem:[#allocation3 + $0x5a0] sm:$0xff]
    %v256 = vld [vmem:[#allocation3 + $0x5a8] sm:$0xff]
    %v257 = vld [vmem:[#allocation3 + $0x5b0] sm:$0xff]
    %v258 = vld [vmem:[#allocation3 + $0x5b8] sm:$0xff]
    %v259 = vld [vmem:[#allocation3 + $0x5c0] sm:$0xff]
    %v260 = vld [vmem:[#allocation3 + $0x5c8] sm:$0xff]
    %v261 = vld [vmem:[#allocation3 + $0x5d0] sm:$0xff]
    %v262 = vld [vmem:[#allocation3 + $0x5d8] sm:$0xff]
    %v263 = vld [vmem:[#allocation3 + $0x5e0] sm:$0xff]
    %v264 = vld [vmem:[#allocation3 + $0x5e8] sm:$0xff]
    %v265 = vld [vmem:[#allocation3 + $0x5f0] sm:$0xff]
    %v266 = vld [vmem:[#allocation3 + $0x5f8] sm:$0xff]
    %v267 = vld [vmem:[#allocation3 + $0x600] sm:$0xff]
    %v268 = vld [vmem:[#allocation3 + $0x608] sm:$0xff]
    %v269 = vld [vmem:[#allocation3 + $0x610] sm:$0xff]
    %v270 = vld [vmem:[#allocation3 + $0x618] sm:$0xff]
    %v271 = vld [vmem:[#allocation3 + $0x620] sm:$0xff]
    %v272 = vld [vmem:[#allocation3 + $0x628] sm:$0xff]
    %v273 = vld [vmem:[#allocation3 + $0x630] sm:$0xff]
    %v274 = vld [vmem:[#allocation3 + $0x638] sm:$0xff]
    %v275 = vld [vmem:[#allocation3 + $0x640] sm:$0xff]
    %v276 = vld [vmem:[#allocation3 + $0x648] sm:$0xff]
    %v277 = vld [vmem:[#allocation3 + $0x650] sm:$0xff]
    %v278 = vld [vmem:[#allocation3 + $0x658] sm:$0xff]
    %v279 = vld [vmem:[#allocation3 + $0x660] sm:$0xff]
    %v280 = vld [vmem:[#allocation3 + $0x668] sm:$0xff]
    %v281 = vld [vmem:[#allocation3 + $0x670] sm:$0xff]
    %v282 = vld [vmem:[#allocation3 + $0x678] sm:$0xff]
    %v283 = vld [vmem:[#allocation3 + $0x680] sm:$0xff]
    %v284 = vld [vmem:[#allocation3 + $0x688] sm:$0xff]
    %v285 = vld [vmem:[#allocation3 + $0x690] sm:$0xff]
    %v286 = vld [vmem:[#allocation3 + $0x698] sm:$0xff]
    %v287 = vld [vmem:[#allocation3 + $0x6a0] sm:$0xff]
    %v288 = vld [vmem:[#allocation3 + $0x6a8] sm:$0xff]
    %v289 = vld [vmem:[#allocation3 + $0x6b0] sm:$0xff]
    %v290 = vld [vmem:[#allocation3 + $0x6b8] sm:$0xff]
    %v291 = vld [vmem:[#allocation3 + $0x6c0] sm:$0xff]
    %v292 = vld [vmem:[#allocation3 + $0x6c8] sm:$0xff]
    %v293 = vld [vmem:[#allocation3 + $0x6d0] sm:$0xff]
    %v294 = vld [vmem:[#allocation3 + $0x6d8] sm:$0xff]
    %v295 = vld [vmem:[#allocation3 + $0x6e0] sm:$0xff]
    %v296 = vld [vmem:[#allocation3 + $0x6e8] sm:$0xff]
    %v297 = vld [vmem:[#allocation3 + $0x6f0] sm:$0xff]
    %v298 = vld [vmem:[#allocation3 + $0x6f8] sm:$0xff]
    %v299 = vld [vmem:[#allocation3 + $0x700] sm:$0xff]
    %v300 = vld [vmem:[#allocation3 + $0x708] sm:$0xff]
    %v301 = vld [vmem:[#allocation3 + $0x710] sm:$0xff]
    %v302 = vld [vmem:[#allocation3 + $0x718] sm:$0xff]
    %v303 = vld [vmem:[#allocation3 + $0x720] sm:$0xff]
    %v304 = vld [vmem:[#allocation3 + $0x728] sm:$0xff]
    %v305 = vld [vmem:[#allocation3 + $0x730] sm:$0xff]
    %v306 = vld [vmem:[#allocation3 + $0x738] sm:$0xff]
    %v307 = vld [vmem:[#allocation3 + $0x740] sm:$0xff]
    %v308 = vld [vmem:[#allocation3 + $0x748] sm:$0xff]
    %v309 = vld [vmem:[#allocation3 + $0x750] sm:$0xff]
    %v310 = vld [vmem:[#allocation3 + $0x758] sm:$0xff]
    %v311 = vld [vmem:[#allocation3 + $0x760] sm:$0xff]
    %v312 = vld [vmem:[#allocation3 + $0x768] sm:$0xff]
    %v313 = vld [vmem:[#allocation3 + $0x770] sm:$0xff]
    %v314 = vld [vmem:[#allocation3 + $0x778] sm:$0xff]
    %v315 = vld [vmem:[#allocation3 + $0x780] sm:$0xff]
    %v316 = vld [vmem:[#allocation3 + $0x788] sm:$0xff]
    %v317 = vld [vmem:[#allocation3 + $0x790] sm:$0xff]
    %v318 = vld [vmem:[#allocation3 + $0x798] sm:$0xff]
    %v319 = vld [vmem:[#allocation3 + $0x7a0] sm:$0xff]
    %v320 = vld [vmem:[#allocation3 + $0x7a8] sm:$0xff]
    %v321 = vld [vmem:[#allocation3 + $0x7b0] sm:$0xff]
    %v322 = vld [vmem:[#allocation3 + $0x7b8] sm:$0xff]
    %v323 = vld [vmem:[#allocation3 + $0x7c0] sm:$0xff]
    %v324 = vld [vmem:[#allocation3 + $0x7c8] sm:$0xff]
    %v325 = vld [vmem:[#allocation3 + $0x7d0] sm:$0xff]
    %v326 = vld [vmem:[#allocation3 + $0x7d8] sm:$0xff]
    %v327 = vld [vmem:[#allocation3 + $0x7e0] sm:$0xff]
    %v328 = vld [vmem:[#allocation3 + $0x7e8] sm:$0xff]
    %v329 = vld [vmem:[#allocation3 + $0x7f0] sm:$0xff]
    %v330 = vld [vmem:[#allocation3 + $0x7f8] sm:$0xff]
    %v331 = vld [vmem:[#allocation3 + $0x800] sm:$0xff]
    %v332 = vld [vmem:[#allocation3 + $0x808] sm:$0xff]
    %v333 = vld [vmem:[#allocation3 + $0x810] sm:$0xff]
    %v334 = vld [vmem:[#allocation3 + $0x818] sm:$0xff]
    %v335 = vld [vmem:[#allocation3 + $0x820] sm:$0xff]
    %v336 = vld [vmem:[#allocation3 + $0x828] sm:$0xff]
    %v337 = vld [vmem:[#allocation3 + $0x830] sm:$0xff]
    %v338 = vld [vmem:[#allocation3 + $0x838] sm:$0xff]
    %v339 = vld [vmem:[#allocation3 + $0x840] sm:$0xff]
    %v340 = vld [vmem:[#allocation3 + $0x848] sm:$0xff]
    %v341 = vld [vmem:[#allocation3 + $0x850] sm:$0xff]
    %v342 = vld [vmem:[#allocation3 + $0x858] sm:$0xff]
    %v343 = vld [vmem:[#allocation3 + $0x860] sm:$0xff]
    %v344 = vld [vmem:[#allocation3 + $0x868] sm:$0xff]
    %v345 = vld [vmem:[#allocation3 + $0x870] sm:$0xff]
    %v346 = vld [vmem:[#allocation3 + $0x878] sm:$0xff]
    %v347 = vld [vmem:[#allocation3 + $0x880] sm:$0xff]
    %v348 = vld [vmem:[#allocation3 + $0x888] sm:$0xff]
    %v349 = vld [vmem:[#allocation3 + $0x890] sm:$0xff]
    %v350 = vld [vmem:[#allocation3 + $0x898] sm:$0xff]
    %v351 = vld [vmem:[#allocation3 + $0x8a0] sm:$0xff]
    %v352 = vld [vmem:[#allocation3 + $0x8a8] sm:$0xff]
    %v353 = vld [vmem:[#allocation3 + $0x8b0] sm:$0xff]
    %v354 = vld [vmem:[#allocation3 + $0x8b8] sm:$0xff]
    %v355 = vld [vmem:[#allocation3 + $0x8c0] sm:$0xff]
    %v356 = vld [vmem:[#allocation3 + $0x8c8] sm:$0xff]
    %v357 = vld [vmem:[#allocation3 + $0x8d0] sm:$0xff]
    %v358 = vld [vmem:[#allocation3 + $0x8d8] sm:$0xff]
    %v359 = vld [vmem:[#allocation3 + $0x8e0] sm:$0xff]
    %v360 = vld [vmem:[#allocation3 + $0x8e8] sm:$0xff]
    %v361 = vld [vmem:[#allocation3 + $0x8f0] sm:$0xff]
    %v362 = vld [vmem:[#allocation3 + $0x8f8] sm:$0xff]
    %v363 = vld [vmem:[#allocation3 + $0x900] sm:$0xff]
    %v364 = vld [vmem:[#allocation3 + $0x908] sm:$0xff]
    %v365 = vld [vmem:[#allocation3 + $0x910] sm:$0xff]
    %v366 = vld [vmem:[#allocation3 + $0x918] sm:$0xff]
    %v367 = vld [vmem:[#allocation3 + $0x920] sm:$0xff]
    %v368 = vld [vmem:[#allocation3 + $0x928] sm:$0xff]
    %v369 = vld [vmem:[#allocation3 + $0x930] sm:$0xff]
    %v370 = vld [vmem:[#allocation3 + $0x938] sm:$0xff]
    %v371 = vld [vmem:[#allocation3 + $0x940] sm:$0xff]
    %v372 = vld [vmem:[#allocation3 + $0x948] sm:$0xff]
    %v373 = vld [vmem:[#allocation3 + $0x950] sm:$0xff]
    %v374 = vld [vmem:[#allocation3 + $0x958] sm:$0xff]
    %v375 = vld [vmem:[#allocation3 + $0x960] sm:$0xff]
    %v376 = vld [vmem:[#allocation3 + $0x968] sm:$0xff]
    %v377 = vld [vmem:[#allocation3 + $0x970] sm:$0xff]
    %v378 = vld [vmem:[#allocation3 + $0x978] sm:$0xff]
    %v379 = vld [vmem:[#allocation3 + $0x980] sm:$0xff]
    %v380 = vld [vmem:[#allocation3 + $0x988] sm:$0xff]
    %v381 = vld [vmem:[#allocation3 + $0x990] sm:$0xff]
    %v382 = vld [vmem:[#allocation3 + $0x998] sm:$0xff]
    %v383 = vld [vmem:[#allocation3 + $0x9a0] sm:$0xff]
    %v384 = vld [vmem:[#allocation3 + $0x9a8] sm:$0xff]
    %v385 = vld [vmem:[#allocation3 + $0x9b0] sm:$0xff]
    %v386 = vld [vmem:[#allocation3 + $0x9b8] sm:$0xff]
    %v387 = vld [vmem:[#allocation3 + $0x9c0] sm:$0xff]
    %v388 = vld [vmem:[#allocation3 + $0x9c8] sm:$0xff]
    %v389 = vld [vmem:[#allocation3 + $0x9d0] sm:$0xff]
    %v390 = vld [vmem:[#allocation3 + $0x9d8] sm:$0xff]
    %v391 = vld [vmem:[#allocation3 + $0x9e0] sm:$0xff]
    %v392 = vld [vmem:[#allocation3 + $0x9e8] sm:$0xff]
    %v393 = vld [vmem:[#allocation3 + $0x9f0] sm:$0xff]
    %v394 = vld [vmem:[#allocation3 + $0x9f8] sm:$0xff]
    %v395 = vpack.c.bf16 %v79, %v75
    %v396 = vpack.c.bf16 %v80, %v76
    %v397 = vpack.c.bf16 %v81, %v77
    %v398 = vpack.c.bf16 %v82, %v78
    %v399 = vpack.c.bf16 %v87, %v83
    %v400 = vpack.c.bf16 %v88, %v84
    %v401 = vpack.c.bf16 %v89, %v85
    %v402 = vpack.c.bf16 %v90, %v86
    %v403 = vpack.c.bf16 %v95, %v91
    %v404 = vpack.c.bf16 %v96, %v92
    %v405 = vpack.c.bf16 %v97, %v93
    %v406 = vpack.c.bf16 %v98, %v94
    %v407 = vpack.c.bf16 %v103, %v99
    %v408 = vpack.c.bf16 %v104, %v100
    %v409 = vpack.c.bf16 %v105, %v101
    %v410 = vpack.c.bf16 %v106, %v102
    %v411 = vpack.c.bf16 %v111, %v107
    %v412 = vpack.c.bf16 %v112, %v108
    %v413 = vpack.c.bf16 %v113, %v109
    %v414 = vpack.c.bf16 %v114, %v110
    %v415 = vpack.c.bf16 %v119, %v115
    %v416 = vpack.c.bf16 %v120, %v116
    %v417 = vpack.c.bf16 %v121, %v117
    %v418 = vpack.c.bf16 %v122, %v118
    %v419 = vpack.c.bf16 %v127, %v123
    %v420 = vpack.c.bf16 %v128, %v124
    %v421 = vpack.c.bf16 %v129, %v125
    %v422 = vpack.c.bf16 %v130, %v126
    %v423 = vpack.c.bf16 %v135, %v131
    %v424 = vpack.c.bf16 %v136, %v132
    %v425 = vpack.c.bf16 %v137, %v133
    %v426 = vpack.c.bf16 %v138, %v134
    %v427 = vpack.c.bf16 %v143, %v139
    %v428 = vpack.c.bf16 %v144, %v140
    %v429 = vpack.c.bf16 %v145, %v141
    %v430 = vpack.c.bf16 %v146, %v142
    %v431 = vpack.c.bf16 %v151, %v147
    %v432 = vpack.c.bf16 %v152, %v148
    %v433 = vpack.c.bf16 %v153, %v149
    %v434 = vpack.c.bf16 %v154, %v150
    %v435 = vpack.c.bf16 %v159, %v155
    %v436 = vpack.c.bf16 %v160, %v156
    %v437 = vpack.c.bf16 %v161, %v157
    %v438 = vpack.c.bf16 %v162, %v158
    %v439 = vpack.c.bf16 %v167, %v163
    %v440 = vpack.c.bf16 %v168, %v164
    %v441 = vpack.c.bf16 %v169, %v165
    %v442 = vpack.c.bf16 %v170, %v166
    %v443 = vpack.c.bf16 %v175, %v171
    %v444 = vpack.c.bf16 %v176, %v172
    %v445 = vpack.c.bf16 %v177, %v173
    %v446 = vpack.c.bf16 %v178, %v174
    %v447 = vpack.c.bf16 %v183, %v179
    %v448 = vpack.c.bf16 %v184, %v180
    %v449 = vpack.c.bf16 %v185, %v181
    %v450 = vpack.c.bf16 %v186, %v182
    %v451 = vpack.c.bf16 %v191, %v187
    %v452 = vpack.c.bf16 %v192, %v188
    %v453 = vpack.c.bf16 %v193, %v189
    %v454 = vpack.c.bf16 %v194, %v190
    %v455 = vpack.c.bf16 %v199, %v195
    %v456 = vpack.c.bf16 %v200, %v196
    %v457 = vpack.c.bf16 %v201, %v197
    %v458 = vpack.c.bf16 %v202, %v198
    %v459 = vpack.c.bf16 %v207, %v203
    %v460 = vpack.c.bf16 %v208, %v204
    %v461 = vpack.c.bf16 %v209, %v205
    %v462 = vpack.c.bf16 %v210, %v206
    %v463 = vpack.c.bf16 %v215, %v211
    %v464 = vpack.c.bf16 %v216, %v212
    %v465 = vpack.c.bf16 %v217, %v213
    %v466 = vpack.c.bf16 %v218, %v214
    %v467 = vpack.c.bf16 %v223, %v219
    %v468 = vpack.c.bf16 %v224, %v220
    %v469 = vpack.c.bf16 %v225, %v221
    %v470 = vpack.c.bf16 %v226, %v222
    %v471 = vpack.c.bf16 %v231, %v227
    %v472 = vpack.c.bf16 %v232, %v228
    %v473 = vpack.c.bf16 %v233, %v229
    %v474 = vpack.c.bf16 %v234, %v230
    %v475 = vpack.c.bf16 %v239, %v235
    %v476 = vpack.c.bf16 %v240, %v236
    %v477 = vpack.c.bf16 %v241, %v237
    %v478 = vpack.c.bf16 %v242, %v238
    %v479 = vpack.c.bf16 %v247, %v243
    %v480 = vpack.c.bf16 %v248, %v244
    %v481 = vpack.c.bf16 %v249, %v245
    %v482 = vpack.c.bf16 %v250, %v246
    %v483 = vpack.c.bf16 %v255, %v251
    %v484 = vpack.c.bf16 %v256, %v252
    %v485 = vpack.c.bf16 %v257, %v253
    %v486 = vpack.c.bf16 %v258, %v254
    %v487 = vpack.c.bf16 %v263, %v259
    %v488 = vpack.c.bf16 %v264, %v260
    %v489 = vpack.c.bf16 %v265, %v261
    %v490 = vpack.c.bf16 %v266, %v262
    %v491 = vpack.c.bf16 %v271, %v267
    %v492 = vpack.c.bf16 %v272, %v268
    %v493 = vpack.c.bf16 %v273, %v269
    %v494 = vpack.c.bf16 %v274, %v270
    %v495 = vpack.c.bf16 %v279, %v275
    %v496 = vpack.c.bf16 %v280, %v276
    %v497 = vpack.c.bf16 %v281, %v277
    %v498 = vpack.c.bf16 %v282, %v278
    %v499 = vpack.c.bf16 %v287, %v283
    %v500 = vpack.c.bf16 %v288, %v284
    %v501 = vpack.c.bf16 %v289, %v285
    %v502 = vpack.c.bf16 %v290, %v286
    %v503 = vpack.c.bf16 %v295, %v291
    %v504 = vpack.c.bf16 %v296, %v292
    %v505 = vpack.c.bf16 %v297, %v293
    %v506 = vpack.c.bf16 %v298, %v294
    %v507 = vpack.c.bf16 %v303, %v299
    %v508 = vpack.c.bf16 %v304, %v300
    %v509 = vpack.c.bf16 %v305, %v301
    %v510 = vpack.c.bf16 %v306, %v302
    %v511 = vpack.c.bf16 %v311, %v307
    %v512 = vpack.c.bf16 %v312, %v308
    %v513 = vpack.c.bf16 %v313, %v309
    %v514 = vpack.c.bf16 %v314, %v310
    %v515 = vpack.c.bf16 %v319, %v315
    %v516 = vpack.c.bf16 %v320, %v316
    %v517 = vpack.c.bf16 %v321, %v317
    %v518 = vpack.c.bf16 %v322, %v318
    %v519 = vpack.c.bf16 %v327, %v323
    %v520 = vpack.c.bf16 %v328, %v324
    %v521 = vpack.c.bf16 %v329, %v325
    %v522 = vpack.c.bf16 %v330, %v326
    %v523 = vpack.c.bf16 %v335, %v331
    %v524 = vpack.c.bf16 %v336, %v332
    %v525 = vpack.c.bf16 %v337, %v333
    %v526 = vpack.c.bf16 %v338, %v334
    %v527 = vpack.c.bf16 %v343, %v339
    %v528 = vpack.c.bf16 %v344, %v340
    %v529 = vpack.c.bf16 %v345, %v341
    %v530 = vpack.c.bf16 %v346, %v342
    %v531 = vpack.c.bf16 %v351, %v347
    %v532 = vpack.c.bf16 %v352, %v348
    %v533 = vpack.c.bf16 %v353, %v349
    %v534 = vpack.c.bf16 %v354, %v350
    %v535 = vpack.c.bf16 %v359, %v355
    %v536 = vpack.c.bf16 %v360, %v356
    %v537 = vpack.c.bf16 %v361, %v357
    %v538 = vpack.c.bf16 %v362, %v358
    %v539 = vpack.c.bf16 %v367, %v363
    %v540 = vpack.c.bf16 %v368, %v364
    %v541 = vpack.c.bf16 %v369, %v365
    %v542 = vpack.c.bf16 %v370, %v366
    %v543 = vpack.c.bf16 %v375, %v371
    %v544 = vpack.c.bf16 %v376, %v372
    %v545 = vpack.c.bf16 %v377, %v373
    %v546 = vpack.c.bf16 %v378, %v374
    %v547 = vpack.c.bf16 %v383, %v379
    %v548 = vpack.c.bf16 %v384, %v380
    %v549 = vpack.c.bf16 %v385, %v381
    %v550 = vpack.c.bf16 %v386, %v382
    %v551 = vpack.c.bf16 %v391, %v387
    %v552 = vpack.c.bf16 %v392, %v388
    %v553 = vpack.c.bf16 %v393, %v389
    %v554 = vpack.c.bf16 %v394, %v390
    %v555 = vld [vmem:[#allocation6] sm:$0xf]
    %v556 = vld [vmem:[#allocation6 + $0x4] sm:$0xf]
    %v557 = vld [vmem:[#allocation6 + $0x8] sm:$0xf]
    %v558 = vld [vmem:[#allocation6 + $0xc] sm:$0xf]
    %v559 = vld [vmem:[#allocation6 + $0x10] sm:$0xf]
    %v560 = vld [vmem:[#allocation6 + $0x14] sm:$0xf]
    %v561 = vld [vmem:[#allocation6 + $0x18] sm:$0xf]
    %v562 = vld [vmem:[#allocation6 + $0x1c] sm:$0xf]
    %v563 = vld [vmem:[#allocation6 + $0x20] sm:$0xf]
    %v564 = vld [vmem:[#allocation6 + $0x24] sm:$0xf]
    %v565 = vld [vmem:[#allocation6 + $0x28] sm:$0xf]
    %v566 = vld [vmem:[#allocation6 + $0x2c] sm:$0xf]
    %v567 = vld [vmem:[#allocation6 + $0x30] sm:$0xf]
    %v568 = vld [vmem:[#allocation6 + $0x34] sm:$0xf]
    %v569 = vld [vmem:[#allocation6 + $0x38] sm:$0xf]
    %v570 = vld [vmem:[#allocation6 + $0x3c] sm:$0xf]
    %v571 = vld [vmem:[#allocation6 + $0x40] sm:$0xf]
    %v572 = vld [vmem:[#allocation6 + $0x44] sm:$0xf]
    %v573 = vld [vmem:[#allocation6 + $0x48] sm:$0xf]
    %v574 = vld [vmem:[#allocation6 + $0x4c] sm:$0xf]
    %v575 = vld [vmem:[#allocation6 + $0x50] sm:$0xf]
    %v576 = vld [vmem:[#allocation6 + $0x54] sm:$0xf]
    %v577 = vld [vmem:[#allocation6 + $0x58] sm:$0xf]
    %v578 = vld [vmem:[#allocation6 + $0x5c] sm:$0xf]
    %v579 = vld [vmem:[#allocation6 + $0x60] sm:$0xf]
    %v580 = vld [vmem:[#allocation6 + $0x64] sm:$0xf]
    %v581 = vld [vmem:[#allocation6 + $0x68] sm:$0xf]
    %v582 = vld [vmem:[#allocation6 + $0x6c] sm:$0xf]
    %v583 = vld [vmem:[#allocation6 + $0x70] sm:$0xf]
    %v584 = vld [vmem:[#allocation6 + $0x74] sm:$0xf]
    %v585 = vld [vmem:[#allocation6 + $0x78] sm:$0xf]
    %v586 = vld [vmem:[#allocation6 + $0x7c] sm:$0xf]
    %v587 = vld [vmem:[#allocation6 + $0x80] sm:$0xf]
    %v588 = vld [vmem:[#allocation6 + $0x84] sm:$0xf]
    %v589 = vld [vmem:[#allocation6 + $0x88] sm:$0xf]
    %v590 = vld [vmem:[#allocation6 + $0x8c] sm:$0xf]
    %v591 = vld [vmem:[#allocation6 + $0x90] sm:$0xf]
    %v592 = vld [vmem:[#allocation6 + $0x94] sm:$0xf]
    %v593 = vld [vmem:[#allocation6 + $0x98] sm:$0xf]
    %v594 = vld [vmem:[#allocation6 + $0x9c] sm:$0xf]
    %v595 = vld [vmem:[#allocation6 + $0xa0] sm:$0xf]
    %v596 = vld [vmem:[#allocation6 + $0xa4] sm:$0xf]
    %v597 = vld [vmem:[#allocation6 + $0xa8] sm:$0xf]
    %v598 = vld [vmem:[#allocation6 + $0xac] sm:$0xf]
    %v599 = vld [vmem:[#allocation6 + $0xb0] sm:$0xf]
    %v600 = vld [vmem:[#allocation6 + $0xb4] sm:$0xf]
    %v601 = vld [vmem:[#allocation6 + $0xb8] sm:$0xf]
    %v602 = vld [vmem:[#allocation6 + $0xbc] sm:$0xf]
    %v603 = vld [vmem:[#allocation6 + $0xc0] sm:$0xf]
    %v604 = vld [vmem:[#allocation6 + $0xc4] sm:$0xf]
    %v605 = vld [vmem:[#allocation6 + $0xc8] sm:$0xf]
    %v606 = vld [vmem:[#allocation6 + $0xcc] sm:$0xf]
    %v607 = vld [vmem:[#allocation6 + $0xd0] sm:$0xf]
    %v608 = vld [vmem:[#allocation6 + $0xd4] sm:$0xf]
    %v609 = vld [vmem:[#allocation6 + $0xd8] sm:$0xf]
    %v610 = vld [vmem:[#allocation6 + $0xdc] sm:$0xf]
    %v611 = vld [vmem:[#allocation6 + $0xe0] sm:$0xf]
    %v612 = vld [vmem:[#allocation6 + $0xe4] sm:$0xf]
    %v613 = vld [vmem:[#allocation6 + $0xe8] sm:$0xf]
    %v614 = vld [vmem:[#allocation6 + $0xec] sm:$0xf]
    %v615 = vld [vmem:[#allocation6 + $0xf0] sm:$0xf]
    %v616 = vld [vmem:[#allocation6 + $0xf4] sm:$0xf]
    %v617 = vld [vmem:[#allocation6 + $0xf8] sm:$0xf]
    %v618 = vld [vmem:[#allocation6 + $0xfc] sm:$0xf]
    %v619 = vld [vmem:[#allocation8] sm:$0x1]
    %v621 = vlaneseq
    %v622 = vshrl.u32 %v621, 7
    %v623 = vsub.s32 0, %v622
    %v624 = vrot.slane %v619, %v623
    %v690 = vunpack.c.l.b16 %v555
    %v691 = vunpack.c.l.b16 %v556
    %v692 = vunpack.c.l.b16 %v557
    %v693 = vunpack.c.l.b16 %v558
    %v694 = vunpack.c.l.b16 %v559
    %v695 = vunpack.c.l.b16 %v560
    %v696 = vunpack.c.l.b16 %v561
    %v697 = vunpack.c.l.b16 %v562
    %v698 = vunpack.c.l.b16 %v563
    %v699 = vunpack.c.l.b16 %v564
    %v700 = vunpack.c.l.b16 %v565
    %v701 = vunpack.c.l.b16 %v566
    %v702 = vunpack.c.l.b16 %v567
    %v703 = vunpack.c.l.b16 %v568
    %v704 = vunpack.c.l.b16 %v569
    %v705 = vunpack.c.l.b16 %v570
    %v706 = vunpack.c.l.b16 %v571
    %v707 = vunpack.c.l.b16 %v572
    %v708 = vunpack.c.l.b16 %v573
    %v709 = vunpack.c.l.b16 %v574
    %v710 = vunpack.c.l.b16 %v575
    %v711 = vunpack.c.l.b16 %v576
    %v712 = vunpack.c.l.b16 %v577
    %v713 = vunpack.c.l.b16 %v578
    %v714 = vunpack.c.l.b16 %v579
    %v715 = vunpack.c.l.b16 %v580
    %v716 = vunpack.c.l.b16 %v581
    %v717 = vunpack.c.l.b16 %v582
    %v718 = vunpack.c.l.b16 %v583
    %v719 = vunpack.c.l.b16 %v584
    %v720 = vunpack.c.l.b16 %v585
    %v721 = vunpack.c.l.b16 %v586
    %v722 = vunpack.c.l.b16 %v587
    %v723 = vunpack.c.l.b16 %v588
    %v724 = vunpack.c.l.b16 %v589
    %v725 = vunpack.c.l.b16 %v590
    %v726 = vunpack.c.l.b16 %v591
    %v727 = vunpack.c.l.b16 %v592
    %v728 = vunpack.c.l.b16 %v593
    %v729 = vunpack.c.l.b16 %v594
    %v730 = vunpack.c.l.b16 %v595
    %v731 = vunpack.c.l.b16 %v596
    %v732 = vunpack.c.l.b16 %v597
    %v733 = vunpack.c.l.b16 %v598
    %v734 = vunpack.c.l.b16 %v599
    %v735 = vunpack.c.l.b16 %v600
    %v736 = vunpack.c.l.b16 %v601
    %v737 = vunpack.c.l.b16 %v602
    %v738 = vunpack.c.l.b16 %v603
    %v739 = vunpack.c.l.b16 %v604
    %v740 = vunpack.c.l.b16 %v605
    %v741 = vunpack.c.l.b16 %v606
    %v742 = vunpack.c.l.b16 %v607
    %v743 = vunpack.c.l.b16 %v608
    %v744 = vunpack.c.l.b16 %v609
    %v745 = vunpack.c.l.b16 %v610
    %v746 = vunpack.c.l.b16 %v611
    %v747 = vunpack.c.l.b16 %v612
    %v748 = vunpack.c.l.b16 %v613
    %v749 = vunpack.c.l.b16 %v614
    %v750 = vunpack.c.l.b16 %v615
    %v751 = vunpack.c.l.b16 %v616
    %v752 = vunpack.c.l.b16 %v617
    %v753 = vunpack.c.l.b16 %v618
    %v754 = vpack.c.b16 %v691, %v690
    %v755 = vpack.c.b16 %v693, %v692
    %v756 = vpack.c.b16 %v695, %v694
    %v757 = vpack.c.b16 %v697, %v696
    %v758 = vpack.c.b16 %v699, %v698
    %v759 = vpack.c.b16 %v701, %v700
    %v760 = vpack.c.b16 %v703, %v702
    %v761 = vpack.c.b16 %v705, %v704
    %v762 = vpack.c.b16 %v707, %v706
    %v763 = vpack.c.b16 %v709, %v708
    %v764 = vpack.c.b16 %v711, %v710
    %v765 = vpack.c.b16 %v713, %v712
    %v766 = vpack.c.b16 %v715, %v714
    %v767 = vpack.c.b16 %v717, %v716
    %v768 = vpack.c.b16 %v719, %v718
    %v769 = vpack.c.b16 %v721, %v720
    %v770 = vpack.c.b16 %v723, %v722
    %v771 = vpack.c.b16 %v725, %v724
    %v772 = vpack.c.b16 %v727, %v726
    %v773 = vpack.c.b16 %v729, %v728
    %v774 = vpack.c.b16 %v731, %v730
    %v775 = vpack.c.b16 %v733, %v732
    %v776 = vpack.c.b16 %v735, %v734
    %v777 = vpack.c.b16 %v737, %v736
    %v778 = vpack.c.b16 %v739, %v738
    %v779 = vpack.c.b16 %v741, %v740
    %v780 = vpack.c.b16 %v743, %v742
    %v781 = vpack.c.b16 %v745, %v744
    %v782 = vpack.c.b16 %v747, %v746
    %v783 = vpack.c.b16 %v749, %v748
    %v784 = vpack.c.b16 %v751, %v750
    %v785 = vpack.c.b16 %v753, %v752
    %818 = vmatprep.subr.bf16.mxu0 0
    %819 = vmatpush1.bf16.msra.mxu0 %v754
    %820 = vmatprep.subr.bf16.mxu0 0
    %821 = vmatpush1.bf16.msra.mxu0 %v755
    %822 = vmatprep.subr.bf16.mxu0 0
    %823 = vmatpush1.bf16.msra.mxu0 %v756
    %824 = vmatprep.subr.bf16.mxu0 0
    %825 = vmatpush1.bf16.msra.mxu0 %v757
    %826 = vmatprep.subr.bf16.mxu0 0
    %827 = vmatpush1.bf16.msra.mxu0 %v758
    %828 = vmatprep.subr.bf16.mxu0 0
    %829 = vmatpush1.bf16.msra.mxu0 %v759
    %830 = vmatprep.subr.bf16.mxu0 0
    %831 = vmatpush1.bf16.msra.mxu0 %v760
    %832 = vmatprep.subr.bf16.mxu0 0
    %833 = vmatpush1.bf16.msra.mxu0 %v761
    %834 = vmatprep.subr.bf16.mxu0 0
    %835 = vmatpush1.bf16.msra.mxu0 %v762
    %836 = vmatprep.subr.bf16.mxu0 0
    %837 = vmatpush1.bf16.msra.mxu0 %v763
    %838 = vmatprep.subr.bf16.mxu0 0
    %839 = vmatpush1.bf16.msra.mxu0 %v764
    %840 = vmatprep.subr.bf16.mxu0 0
    %841 = vmatpush1.bf16.msra.mxu0 %v765
    %842 = vmatprep.subr.bf16.mxu0 0
    %843 = vmatpush1.bf16.msra.mxu0 %v766
    %844 = vmatprep.subr.bf16.mxu0 0
    %845 = vmatpush1.bf16.msra.mxu0 %v767
    %846 = vmatprep.subr.bf16.mxu0 0
    %847 = vmatpush1.bf16.msra.mxu0 %v768
    %848 = vmatprep.subr.bf16.mxu0 0
    %849 = vmatpush1.bf16.msra.mxu0 %v769
    %850 = vmatprep.mubr.bf16.mxu0 %v396
    %851 = vmatmul.mubr.bf16.gmra.mrb[0].mxu0 %v395
    %v852 = vpop.f32.mrb[0].mxu0
    %v853 = vadd.f32 %v624, %v852
    %v854 = vpop.f32.mrb[0].mxu0
    %v855 = vpop.f32.mrb[0].mxu0
    %v856 = vadd.f32 %v624, %v855
    %v857 = vpop.f32.mrb[0].mxu0
    %858 = vmatprep.mubr.bf16.mxu0 %v400
    %859 = vmatmul.mubr.bf16.gmra.mrb[0].mxu0 %v399
    %v860 = vpop.f32.mrb[0].mxu0
    %v861 = vadd.f32 %v624, %v860
    %v862 = vpop.f32.mrb[0].mxu0
    %v863 = vpop.f32.mrb[0].mxu0
    %v864 = vadd.f32 %v624, %v863
    %v865 = vpop.f32.mrb[0].mxu0
    %866 = vmatprep.mubr.bf16.mxu0 %v404
    %867 = vmatmul.mubr.bf16.gmra.mrb[0].mxu0 %v403
    %v868 = vpop.f32.mrb[0].mxu0
    %v869 = vadd.f32 %v624, %v868
    %v870 = vpop.f32.mrb[0].mxu0
    %v871 = vpop.f32.mrb[0].mxu0
    %v872 = vadd.f32 %v624, %v871
    %v873 = vpop.f32.mrb[0].mxu0
    %874 = vmatprep.mubr.bf16.mxu0 %v408
    %875 = vmatmul.mubr.bf16.gmra.mrb[0].mxu0 %v407
    %v876 = vpop.f32.mrb[0].mxu0
    %v877 = vadd.f32 %v624, %v876
    %v878 = vpop.f32.mrb[0].mxu0
    %v879 = vpop.f32.mrb[0].mxu0
    %v880 = vadd.f32 %v624, %v879
    %v881 = vpop.f32.mrb[0].mxu0
    %882 = vmatprep.mubr.bf16.mxu0 %v412
    %883 = vmatmul.mubr.bf16.gmra.mrb[0].mxu0 %v411
    %v884 = vpop.f32.mrb[0].mxu0
    %v885 = vadd.f32 %v624, %v884
    %v886 = vpop.f32.mrb[0].mxu0
    %v887 = vpop.f32.mrb[0].mxu0
    %v888 = vadd.f32 %v624, %v887
    %v889 = vpop.f32.mrb[0].mxu0
    %890 = vmatprep.mubr.bf16.mxu0 %v416
    %891 = vmatmul.mubr.bf16.gmra.mrb[0].mxu0 %v415
    %v892 = vpop.f32.mrb[0].mxu0
    %v893 = vadd.f32 %v624, %v892
    %v894 = vpop.f32.mrb[0].mxu0
    %v895 = vpop.f32.mrb[0].mxu0
    %v896 = vadd.f32 %v624, %v895
    %v897 = vpop.f32.mrb[0].mxu0
    %898 = vmatprep.mubr.bf16.mxu0 %v420
    %899 = vmatmul.mubr.bf16.gmra.mrb[0].mxu0 %v419
    %v900 = vpop.f32.mrb[0].mxu0
    %v901 = vadd.f32 %v624, %v900
    %v902 = vpop.f32.mrb[0].mxu0
    %v903 = vpop.f32.mrb[0].mxu0
    %v904 = vadd.f32 %v624, %v903
    %v905 = vpop.f32.mrb[0].mxu0
    %906 = vmatprep.mubr.bf16.mxu0 %v424
    %907 = vmatmul.mubr.bf16.gmra.mrb[0].mxu0 %v423
    %v908 = vpop.f32.mrb[0].mxu0
    %v909 = vadd.f32 %v624, %v908
    %v910 = vpop.f32.mrb[0].mxu0
    %v911 = vpop.f32.mrb[0].mxu0
    %v912 = vadd.f32 %v624, %v911
    %v913 = vpop.f32.mrb[0].mxu0
    %914 = vmatprep.mubr.bf16.mxu0 %v428
    %915 = vmatmul.mubr.bf16.gmra.mrb[0].mxu0 %v427
    %v916 = vpop.f32.mrb[0].mxu0
    %v917 = vadd.f32 %v624, %v916
    %v918 = vpop.f32.mrb[0].mxu0
    %v919 = vpop.f32.mrb[0].mxu0
    %v920 = vadd.f32 %v624, %v919
    %v921 = vpop.f32.mrb[0].mxu0
    %922 = vmatprep.mubr.bf16.mxu0 %v432
    %923 = vmatmul.mubr.bf16.gmra.mrb[0].mxu0 %v431
    %v924 = vpop.f32.mrb[0].mxu0
    %v925 = vadd.f32 %v624, %v924
    %v926 = vpop.f32.mrb[0].mxu0
    %v927 = vpop.f32.mrb[0].mxu0
    %v928 = vadd.f32 %v624, %v927
    %v929 = vpop.f32.mrb[0].mxu0
    %930 = vmatprep.mubr.bf16.mxu0 %v436
    %931 = vmatmul.mubr.bf16.gmra.mrb[0].mxu0 %v435
    %v932 = vpop.f32.mrb[0].mxu0
    %v933 = vadd.f32 %v624, %v932
    %v934 = vpop.f32.mrb[0].mxu0
    %v935 = vpop.f32.mrb[0].mxu0
    %v936 = vadd.f32 %v624, %v935
    %v937 = vpop.f32.mrb[0].mxu0
    %938 = vmatprep.mubr.bf16.mxu0 %v440
    %939 = vmatmul.mubr.bf16.gmra.mrb[0].mxu0 %v439
    %v940 = vpop.f32.mrb[0].mxu0
    %v941 = vadd.f32 %v624, %v940
    %v942 = vpop.f32.mrb[0].mxu0
    %v943 = vpop.f32.mrb[0].mxu0
    %v944 = vadd.f32 %v624, %v943
    %v945 = vpop.f32.mrb[0].mxu0
    %946 = vmatprep.mubr.bf16.mxu0 %v444
    %947 = vmatmul.mubr.bf16.gmra.mrb[0].mxu0 %v443
    %v948 = vpop.f32.mrb[0].mxu0
    %v949 = vadd.f32 %v624, %v948
    %v950 = vpop.f32.mrb[0].mxu0
    %v951 = vpop.f32.mrb[0].mxu0
    %v952 = vadd.f32 %v624, %v951
    %v953 = vpop.f32.mrb[0].mxu0
    %954 = vmatprep.mubr.bf16.mxu0 %v448
    %955 = vmatmul.mubr.bf16.gmra.mrb[0].mxu0 %v447
    %v956 = vpop.f32.mrb[0].mxu0
    %v957 = vadd.f32 %v624, %v956
    %v958 = vpop.f32.mrb[0].mxu0
    %v959 = vpop.f32.mrb[0].mxu0
    %v960 = vadd.f32 %v624, %v959
    %v961 = vpop.f32.mrb[0].mxu0
    %962 = vmatprep.mubr.bf16.mxu0 %v452
    %963 = vmatmul.mubr.bf16.gmra.mrb[0].mxu0 %v451
    %v964 = vpop.f32.mrb[0].mxu0
    %v965 = vadd.f32 %v624, %v964
    %v966 = vpop.f32.mrb[0].mxu0
    %v967 = vpop.f32.mrb[0].mxu0
    %v968 = vadd.f32 %v624, %v967
    %v969 = vpop.f32.mrb[0].mxu0
    %970 = vmatprep.mubr.bf16.mxu0 %v456
    %971 = vmatmul.mubr.bf16.gmra.mrb[0].mxu0 %v455
    %v972 = vpop.f32.mrb[0].mxu0
    %v973 = vadd.f32 %v624, %v972
    %v974 = vpop.f32.mrb[0].mxu0
    %v975 = vpop.f32.mrb[0].mxu0
    %v976 = vadd.f32 %v624, %v975
    %v977 = vpop.f32.mrb[0].mxu0
    %978 = vmatprep.mubr.bf16.mxu0 %v460
    %979 = vmatmul.mubr.bf16.gmra.mrb[0].mxu0 %v459
    %v980 = vpop.f32.mrb[0].mxu0
    %v981 = vadd.f32 %v624, %v980
    %v982 = vpop.f32.mrb[0].mxu0
    %v983 = vpop.f32.mrb[0].mxu0
    %v984 = vadd.f32 %v624, %v983
    %v985 = vpop.f32.mrb[0].mxu0
    %986 = vmatprep.mubr.bf16.mxu0 %v464
    %987 = vmatmul.mubr.bf16.gmra.mrb[0].mxu0 %v463
    %v988 = vpop.f32.mrb[0].mxu0
    %v989 = vadd.f32 %v624, %v988
    %v990 = vpop.f32.mrb[0].mxu0
    %v991 = vpop.f32.mrb[0].mxu0
    %v992 = vadd.f32 %v624, %v991
    %v993 = vpop.f32.mrb[0].mxu0
    %994 = vmatprep.mubr.bf16.mxu0 %v468
    %995 = vmatmul.mubr.bf16.gmra.mrb[0].mxu0 %v467
    %v996 = vpop.f32.mrb[0].mxu0
    %v997 = vadd.f32 %v624, %v996
    %v998 = vpop.f32.mrb[0].mxu0
    %v999 = vpop.f32.mrb[0].mxu0
    %v1000 = vadd.f32 %v624, %v999
    %v1001 = vpop.f32.mrb[0].mxu0
    %1002 = vmatprep.mubr.bf16.mxu0 %v472
    %1003 = vmatmul.mubr.bf16.gmra.mrb[0].mxu0 %v471
    %v1004 = vpop.f32.mrb[0].mxu0
    %v1005 = vadd.f32 %v624, %v1004
    %v1006 = vpop.f32.mrb[0].mxu0
    %v1007 = vpop.f32.mrb[0].mxu0
    %v1008 = vadd.f32 %v624, %v1007
    %v1009 = vpop.f32.mrb[0].mxu0
    %1010 = vmatprep.mubr.bf16.mxu0 %v476
    %1011 = vmatmul.mubr.bf16.gmra.mrb[0].mxu0 %v475
    %v1012 = vpop.f32.mrb[0].mxu0
    %v1013 = vadd.f32 %v624, %v1012
    %v1014 = vpop.f32.mrb[0].mxu0
    %v1015 = vpop.f32.mrb[0].mxu0
    %v1016 = vadd.f32 %v624, %v1015
    %v1017 = vpop.f32.mrb[0].mxu0
    %1018 = vmatprep.mubr.bf16.mxu0 %v480
    %1019 = vmatmul.mubr.bf16.gmra.mrb[0].mxu0 %v479
    %v1020 = vpop.f32.mrb[0].mxu0
    %v1021 = vadd.f32 %v624, %v1020
    %v1022 = vpop.f32.mrb[0].mxu0
    %v1023 = vpop.f32.mrb[0].mxu0
    %v1024 = vadd.f32 %v624, %v1023
    %v1025 = vpop.f32.mrb[0].mxu0
    %1026 = vmatprep.mubr.bf16.mxu0 %v484
    %1027 = vmatmul.mubr.bf16.gmra.mrb[0].mxu0 %v483
    %v1028 = vpop.f32.mrb[0].mxu0
    %v1029 = vadd.f32 %v624, %v1028
    %v1030 = vpop.f32.mrb[0].mxu0
    %v1031 = vpop.f32.mrb[0].mxu0
    %v1032 = vadd.f32 %v624, %v1031
    %v1033 = vpop.f32.mrb[0].mxu0
    %1034 = vmatprep.mubr.bf16.mxu0 %v488
    %1035 = vmatmul.mubr.bf16.gmra.mrb[0].mxu0 %v487
    %v1036 = vpop.f32.mrb[0].mxu0
    %v1037 = vadd.f32 %v624, %v1036
    %v1038 = vpop.f32.mrb[0].mxu0
    %v1039 = vpop.f32.mrb[0].mxu0
    %v1040 = vadd.f32 %v624, %v1039
    %v1041 = vpop.f32.mrb[0].mxu0
    %1042 = vmatprep.mubr.bf16.mxu0 %v492
    %1043 = vmatmul.mubr.bf16.gmra.mrb[0].mxu0 %v491
    %v1044 = vpop.f32.mrb[0].mxu0
    %v1045 = vadd.f32 %v624, %v1044
    %v1046 = vpop.f32.mrb[0].mxu0
    %v1047 = vpop.f32.mrb[0].mxu0
    %v1048 = vadd.f32 %v624, %v1047
    %v1049 = vpop.f32.mrb[0].mxu0
    %1050 = vmatprep.mubr.bf16.mxu0 %v496
    %1051 = vmatmul.mubr.bf16.gmra.mrb[0].mxu0 %v495
    %v1052 = vpop.f32.mrb[0].mxu0
    %v1053 = vadd.f32 %v624, %v1052
    %v1054 = vpop.f32.mrb[0].mxu0
    %v1055 = vpop.f32.mrb[0].mxu0
    %v1056 = vadd.f32 %v624, %v1055
    %v1057 = vpop.f32.mrb[0].mxu0
    %1058 = vmatprep.mubr.bf16.mxu0 %v500
    %1059 = vmatmul.mubr.bf16.gmra.mrb[0].mxu0 %v499
    %v1060 = vpop.f32.mrb[0].mxu0
    %v1061 = vadd.f32 %v624, %v1060
    %v1062 = vpop.f32.mrb[0].mxu0
    %v1063 = vpop.f32.mrb[0].mxu0
    %v1064 = vadd.f32 %v624, %v1063
    %v1065 = vpop.f32.mrb[0].mxu0
    %1066 = vmatprep.mubr.bf16.mxu0 %v504
    %1067 = vmatmul.mubr.bf16.gmra.mrb[0].mxu0 %v503
    %v1068 = vpop.f32.mrb[0].mxu0
    %v1069 = vadd.f32 %v624, %v1068
    %v1070 = vpop.f32.mrb[0].mxu0
    %v1071 = vpop.f32.mrb[0].mxu0
    %v1072 = vadd.f32 %v624, %v1071
    %v1073 = vpop.f32.mrb[0].mxu0
    %1074 = vmatprep.mubr.bf16.mxu0 %v508
    %1075 = vmatmul.mubr.bf16.gmra.mrb[0].mxu0 %v507
    %v1076 = vpop.f32.mrb[0].mxu0
    %v1077 = vadd.f32 %v624, %v1076
    %v1078 = vpop.f32.mrb[0].mxu0
    %v1079 = vpop.f32.mrb[0].mxu0
    %v1080 = vadd.f32 %v624, %v1079
    %v1081 = vpop.f32.mrb[0].mxu0
    %1082 = vmatprep.mubr.bf16.mxu0 %v512
    %1083 = vmatmul.mubr.bf16.gmra.mrb[0].mxu0 %v511
    %v1084 = vpop.f32.mrb[0].mxu0
    %v1085 = vadd.f32 %v624, %v1084
    %v1086 = vpop.f32.mrb[0].mxu0
    %v1087 = vpop.f32.mrb[0].mxu0
    %v1088 = vadd.f32 %v624, %v1087
    %v1089 = vpop.f32.mrb[0].mxu0
    %1090 = vmatprep.mubr.bf16.mxu0 %v516
    %1091 = vmatmul.mubr.bf16.gmra.mrb[0].mxu0 %v515
    %v1092 = vpop.f32.mrb[0].mxu0
    %v1093 = vadd.f32 %v624, %v1092
    %v1094 = vpop.f32.mrb[0].mxu0
    %v1095 = vpop.f32.mrb[0].mxu0
    %v1096 = vadd.f32 %v624, %v1095
    %v1097 = vpop.f32.mrb[0].mxu0
    %1098 = vmatprep.mubr.bf16.mxu0 %v520
    %1099 = vmatmul.mubr.bf16.gmra.mrb[0].mxu0 %v519
    %v1100 = vpop.f32.mrb[0].mxu0
    %v1101 = vadd.f32 %v624, %v1100
    %v1102 = vpop.f32.mrb[0].mxu0
    %v1103 = vpop.f32.mrb[0].mxu0
    %v1104 = vadd.f32 %v624, %v1103
    %v1105 = vpop.f32.mrb[0].mxu0
    %1106 = vmatprep.mubr.bf16.mxu0 %v524
    %1107 = vmatmul.mubr.bf16.gmra.mrb[0].mxu0 %v523
    %v1108 = vpop.f32.mrb[0].mxu0
    %v1109 = vadd.f32 %v624, %v1108
    %v1110 = vpop.f32.mrb[0].mxu0
    %v1111 = vpop.f32.mrb[0].mxu0
    %v1112 = vadd.f32 %v624, %v1111
    %v1113 = vpop.f32.mrb[0].mxu0
    %1114 = vmatprep.mubr.bf16.mxu0 %v528
    %1115 = vmatmul.mubr.bf16.gmra.mrb[0].mxu0 %v527
    %v1116 = vpop.f32.mrb[0].mxu0
    %v1117 = vadd.f32 %v624, %v1116
    %v1118 = vpop.f32.mrb[0].mxu0
    %v1119 = vpop.f32.mrb[0].mxu0
    %v1120 = vadd.f32 %v624, %v1119
    %v1121 = vpop.f32.mrb[0].mxu0
    %1122 = vmatprep.mubr.bf16.mxu0 %v532
    %1123 = vmatmul.mubr.bf16.gmra.mrb[0].mxu0 %v531
    %v1124 = vpop.f32.mrb[0].mxu0
    %v1125 = vadd.f32 %v624, %v1124
    %v1126 = vpop.f32.mrb[0].mxu0
    %v1127 = vpop.f32.mrb[0].mxu0
    %v1128 = vadd.f32 %v624, %v1127
    %v1129 = vpop.f32.mrb[0].mxu0
    %1130 = vmatprep.mubr.bf16.mxu0 %v536
    %1131 = vmatmul.mubr.bf16.gmra.mrb[0].mxu0 %v535
    %v1132 = vpop.f32.mrb[0].mxu0
    %v1133 = vadd.f32 %v624, %v1132
    %v1134 = vpop.f32.mrb[0].mxu0
    %v1135 = vpop.f32.mrb[0].mxu0
    %v1136 = vadd.f32 %v624, %v1135
    %v1137 = vpop.f32.mrb[0].mxu0
    %1138 = vmatprep.mubr.bf16.mxu0 %v540
    %1139 = vmatmul.mubr.bf16.gmra.mrb[0].mxu0 %v539
    %v1140 = vpop.f32.mrb[0].mxu0
    %v1141 = vadd.f32 %v624, %v1140
    %v1142 = vpop.f32.mrb[0].mxu0
    %v1143 = vpop.f32.mrb[0].mxu0
    %v1144 = vadd.f32 %v624, %v1143
    %v1145 = vpop.f32.mrb[0].mxu0
    %1146 = vmatprep.mubr.bf16.mxu0 %v544
    %1147 = vmatmul.mubr.bf16.gmra.mrb[0].mxu0 %v543
    %v1148 = vpop.f32.mrb[0].mxu0
    %v1149 = vadd.f32 %v624, %v1148
    %v1150 = vpop.f32.mrb[0].mxu0
    %v1151 = vpop.f32.mrb[0].mxu0
    %v1152 = vadd.f32 %v624, %v1151
    %v1153 = vpop.f32.mrb[0].mxu0
    %1154 = vmatprep.mubr.bf16.mxu0 %v548
    %1155 = vmatmul.mubr.bf16.gmra.mrb[0].mxu0 %v547
    %v1156 = vpop.f32.mrb[0].mxu0
    %v1157 = vadd.f32 %v624, %v1156
    %v1158 = vpop.f32.mrb[0].mxu0
    %v1159 = vpop.f32.mrb[0].mxu0
    %v1160 = vadd.f32 %v624, %v1159
    %v1161 = vpop.f32.mrb[0].mxu0
    %1162 = vmatprep.mubr.bf16.mxu0 %v552
    %1163 = vmatmul.mubr.bf16.gmra.mrb[0].mxu0 %v551
    %v1164 = vpop.f32.mrb[0].mxu0
    %v1165 = vadd.f32 %v624, %v1164
    %v1166 = vpop.f32.mrb[0].mxu0
    %v1167 = vpop.f32.mrb[0].mxu0
    %v1168 = vadd.f32 %v624, %v1167
    %v1169 = vpop.f32.mrb[0].mxu0
    %1170 = vdwg.mxu0
    %1171 = vmatprep.subr.bf16.mxu0 0
    %1172 = vmatpush1.bf16.msra.mxu0 %v770
    %1173 = vmatprep.subr.bf16.mxu0 0
    %1174 = vmatpush1.bf16.msra.mxu0 %v771
    %1175 = vmatprep.subr.bf16.mxu0 0
    %1176 = vmatpush1.bf16.msra.mxu0 %v772
    %1177 = vmatprep.subr.bf16.mxu0 0
    %1178 = vmatpush1.bf16.msra.mxu0 %v773
    %1179 = vmatprep.subr.bf16.mxu0 0
    %1180 = vmatpush1.bf16.msra.mxu0 %v774
    %1181 = vmatprep.subr.bf16.mxu0 0
    %1182 = vmatpush1.bf16.msra.mxu0 %v775
    %1183 = vmatprep.subr.bf16.mxu0 0
    %1184 = vmatpush1.bf16.msra.mxu0 %v776
    %1185 = vmatprep.subr.bf16.mxu0 0
    %1186 = vmatpush1.bf16.msra.mxu0 %v777
    %1187 = vmatprep.subr.bf16.mxu0 0
    %1188 = vmatpush1.bf16.msra.mxu0 %v778
    %1189 = vmatprep.subr.bf16.mxu0 0
    %1190 = vmatpush1.bf16.msra.mxu0 %v779
    %1191 = vmatprep.subr.bf16.mxu0 0
    %1192 = vmatpush1.bf16.msra.mxu0 %v780
    %1193 = vmatprep.subr.bf16.mxu0 0
    %1194 = vmatpush1.bf16.msra.mxu0 %v781
    %1195 = vmatprep.subr.bf16.mxu0 0
    %1196 = vmatpush1.bf16.msra.mxu0 %v782
    %1197 = vmatprep.subr.bf16.mxu0 0
    %1198 = vmatpush1.bf16.msra.mxu0 %v783
    %1199 = vmatprep.subr.bf16.mxu0 0
    %1200 = vmatpush1.bf16.msra.mxu0 %v784
    %1201 = vmatprep.subr.bf16.mxu0 0
    %1202 = vmatpush1.bf16.msra.mxu0 %v785
    %1203 = vmatprep.mubr.bf16.mxu0 %v398
    %1204 = vmatmul.mubr.bf16.gmra.mrb[0].mxu0 %v397
    %v1205 = vpop.f32.mrb[0].mxu0
    %v1206 = vadd.f32 %v853, %v1205
    %v1207 = vpop.f32.mrb[0].mxu0
    %v1208 = vpop.f32.mrb[0].mxu0
    %v1209 = vadd.f32 %v856, %v1208
    %v1210 = vpop.f32.mrb[0].mxu0
    %1211 = vmatprep.mubr.bf16.mxu0 %v402
    %1212 = vmatmul.mubr.bf16.gmra.mrb[0].mxu0 %v401
    %v1213 = vpop.f32.mrb[0].mxu0
    %v1214 = vadd.f32 %v861, %v1213
    %v1215 = vpop.f32.mrb[0].mxu0
    %v1216 = vpop.f32.mrb[0].mxu0
    %v1217 = vadd.f32 %v864, %v1216
    %v1218 = vpop.f32.mrb[0].mxu0
    %1219 = vmatprep.mubr.bf16.mxu0 %v406
    %1220 = vmatmul.mubr.bf16.gmra.mrb[0].mxu0 %v405
    %v1221 = vpop.f32.mrb[0].mxu0
    %v1222 = vadd.f32 %v869, %v1221
    %v1223 = vpop.f32.mrb[0].mxu0
    %v1224 = vpop.f32.mrb[0].mxu0
    %v1225 = vadd.f32 %v872, %v1224
    %v1226 = vpop.f32.mrb[0].mxu0
    %1227 = vmatprep.mubr.bf16.mxu0 %v410
    %1228 = vmatmul.mubr.bf16.gmra.mrb[0].mxu0 %v409
    %v1229 = vpop.f32.mrb[0].mxu0
    %v1230 = vadd.f32 %v877, %v1229
    %v1231 = vpop.f32.mrb[0].mxu0
    %v1232 = vpop.f32.mrb[0].mxu0
    %v1233 = vadd.f32 %v880, %v1232
    %v1234 = vpop.f32.mrb[0].mxu0
    %1235 = vmatprep.mubr.bf16.mxu0 %v414
    %1236 = vmatmul.mubr.bf16.gmra.mrb[0].mxu0 %v413
    %v1237 = vpop.f32.mrb[0].mxu0
    %v1238 = vadd.f32 %v885, %v1237
    %v1239 = vpop.f32.mrb[0].mxu0
    %v1240 = vpop.f32.mrb[0].mxu0
    %v1241 = vadd.f32 %v888, %v1240
    %v1242 = vpop.f32.mrb[0].mxu0
    %1243 = vmatprep.mubr.bf16.mxu0 %v418
    %1244 = vmatmul.mubr.bf16.gmra.mrb[0].mxu0 %v417
    %v1245 = vpop.f32.mrb[0].mxu0
    %v1246 = vadd.f32 %v893, %v1245
    %v1247 = vpop.f32.mrb[0].mxu0
    %v1248 = vpop.f32.mrb[0].mxu0
    %v1249 = vadd.f32 %v896, %v1248
    %v1250 = vpop.f32.mrb[0].mxu0
    %1251 = vmatprep.mubr.bf16.mxu0 %v422
    %1252 = vmatmul.mubr.bf16.gmra.mrb[0].mxu0 %v421
    %v1253 = vpop.f32.mrb[0].mxu0
    %v1254 = vadd.f32 %v901, %v1253
    %v1255 = vpop.f32.mrb[0].mxu0
    %v1256 = vpop.f32.mrb[0].mxu0
    %v1257 = vadd.f32 %v904, %v1256
    %v1258 = vpop.f32.mrb[0].mxu0
    %1259 = vmatprep.mubr.bf16.mxu0 %v426
    %1260 = vmatmul.mubr.bf16.gmra.mrb[0].mxu0 %v425
    %v1261 = vpop.f32.mrb[0].mxu0
    %v1262 = vadd.f32 %v909, %v1261
    %v1263 = vpop.f32.mrb[0].mxu0
    %v1264 = vpop.f32.mrb[0].mxu0
    %v1265 = vadd.f32 %v912, %v1264
    %v1266 = vpop.f32.mrb[0].mxu0
    %1267 = vmatprep.mubr.bf16.mxu0 %v430
    %1268 = vmatmul.mubr.bf16.gmra.mrb[0].mxu0 %v429
    %v1269 = vpop.f32.mrb[0].mxu0
    %v1270 = vadd.f32 %v917, %v1269
    %v1271 = vpop.f32.mrb[0].mxu0
    %v1272 = vpop.f32.mrb[0].mxu0
    %v1273 = vadd.f32 %v920, %v1272
    %v1274 = vpop.f32.mrb[0].mxu0
    %1275 = vmatprep.mubr.bf16.mxu0 %v434
    %1276 = vmatmul.mubr.bf16.gmra.mrb[0].mxu0 %v433
    %v1277 = vpop.f32.mrb[0].mxu0
    %v1278 = vadd.f32 %v925, %v1277
    %v1279 = vpop.f32.mrb[0].mxu0
    %v1280 = vpop.f32.mrb[0].mxu0
    %v1281 = vadd.f32 %v928, %v1280
    %v1282 = vpop.f32.mrb[0].mxu0
    %1283 = vmatprep.mubr.bf16.mxu0 %v438
    %1284 = vmatmul.mubr.bf16.gmra.mrb[0].mxu0 %v437
    %v1285 = vpop.f32.mrb[0].mxu0
    %v1286 = vadd.f32 %v933, %v1285
    %v1287 = vpop.f32.mrb[0].mxu0
    %v1288 = vpop.f32.mrb[0].mxu0
    %v1289 = vadd.f32 %v936, %v1288
    %v1290 = vpop.f32.mrb[0].mxu0
    %1291 = vmatprep.mubr.bf16.mxu0 %v442
    %1292 = vmatmul.mubr.bf16.gmra.mrb[0].mxu0 %v441
    %v1293 = vpop.f32.mrb[0].mxu0
    %v1294 = vadd.f32 %v941, %v1293
    %v1295 = vpop.f32.mrb[0].mxu0
    %v1296 = vpop.f32.mrb[0].mxu0
    %v1297 = vadd.f32 %v944, %v1296
    %v1298 = vpop.f32.mrb[0].mxu0
    %1299 = vmatprep.mubr.bf16.mxu0 %v446
    %1300 = vmatmul.mubr.bf16.gmra.mrb[0].mxu0 %v445
    %v1301 = vpop.f32.mrb[0].mxu0
    %v1302 = vadd.f32 %v949, %v1301
    %v1303 = vpop.f32.mrb[0].mxu0
    %v1304 = vpop.f32.mrb[0].mxu0
    %v1305 = vadd.f32 %v952, %v1304
    %v1306 = vpop.f32.mrb[0].mxu0
    %1307 = vmatprep.mubr.bf16.mxu0 %v450
    %1308 = vmatmul.mubr.bf16.gmra.mrb[0].mxu0 %v449
    %v1309 = vpop.f32.mrb[0].mxu0
    %v1310 = vadd.f32 %v957, %v1309
    %v1311 = vpop.f32.mrb[0].mxu0
    %v1312 = vpop.f32.mrb[0].mxu0
    %v1313 = vadd.f32 %v960, %v1312
    %v1314 = vpop.f32.mrb[0].mxu0
    %1315 = vmatprep.mubr.bf16.mxu0 %v454
    %1316 = vmatmul.mubr.bf16.gmra.mrb[0].mxu0 %v453
    %v1317 = vpop.f32.mrb[0].mxu0
    %v1318 = vadd.f32 %v965, %v1317
    %v1319 = vpop.f32.mrb[0].mxu0
    %v1320 = vpop.f32.mrb[0].mxu0
    %v1321 = vadd.f32 %v968, %v1320
    %v1322 = vpop.f32.mrb[0].mxu0
    %1323 = vmatprep.mubr.bf16.mxu0 %v458
    %1324 = vmatmul.mubr.bf16.gmra.mrb[0].mxu0 %v457
    %v1325 = vpop.f32.mrb[0].mxu0
    %v1326 = vadd.f32 %v973, %v1325
    %v1327 = vpop.f32.mrb[0].mxu0
    %v1328 = vpop.f32.mrb[0].mxu0
    %v1329 = vadd.f32 %v976, %v1328
    %v1330 = vpop.f32.mrb[0].mxu0
    %1331 = vmatprep.mubr.bf16.mxu0 %v462
    %1332 = vmatmul.mubr.bf16.gmra.mrb[0].mxu0 %v461
    %v1333 = vpop.f32.mrb[0].mxu0
    %v1334 = vadd.f32 %v981, %v1333
    %v1335 = vpop.f32.mrb[0].mxu0
    %v1336 = vpop.f32.mrb[0].mxu0
    %v1337 = vadd.f32 %v984, %v1336
    %v1338 = vpop.f32.mrb[0].mxu0
    %1339 = vmatprep.mubr.bf16.mxu0 %v466
    %1340 = vmatmul.mubr.bf16.gmra.mrb[0].mxu0 %v465
    %v1341 = vpop.f32.mrb[0].mxu0
    %v1342 = vadd.f32 %v989, %v1341
    %v1343 = vpop.f32.mrb[0].mxu0
    %v1344 = vpop.f32.mrb[0].mxu0
    %v1345 = vadd.f32 %v992, %v1344
    %v1346 = vpop.f32.mrb[0].mxu0
    %1347 = vmatprep.mubr.bf16.mxu0 %v470
    %1348 = vmatmul.mubr.bf16.gmra.mrb[0].mxu0 %v469
    %v1349 = vpop.f32.mrb[0].mxu0
    %v1350 = vadd.f32 %v997, %v1349
    %v1351 = vpop.f32.mrb[0].mxu0
    %v1352 = vpop.f32.mrb[0].mxu0
    %v1353 = vadd.f32 %v1000, %v1352
    %v1354 = vpop.f32.mrb[0].mxu0
    %1355 = vmatprep.mubr.bf16.mxu0 %v474
    %1356 = vmatmul.mubr.bf16.gmra.mrb[0].mxu0 %v473
    %v1357 = vpop.f32.mrb[0].mxu0
    %v1358 = vadd.f32 %v1005, %v1357
    %v1359 = vpop.f32.mrb[0].mxu0
    %v1360 = vpop.f32.mrb[0].mxu0
    %v1361 = vadd.f32 %v1008, %v1360
    %v1362 = vpop.f32.mrb[0].mxu0
    %1363 = vmatprep.mubr.bf16.mxu0 %v478
    %1364 = vmatmul.mubr.bf16.gmra.mrb[0].mxu0 %v477
    %v1365 = vpop.f32.mrb[0].mxu0
    %v1366 = vadd.f32 %v1013, %v1365
    %v1367 = vpop.f32.mrb[0].mxu0
    %v1368 = vpop.f32.mrb[0].mxu0
    %v1369 = vadd.f32 %v1016, %v1368
    %v1370 = vpop.f32.mrb[0].mxu0
    %1371 = vmatprep.mubr.bf16.mxu0 %v482
    %1372 = vmatmul.mubr.bf16.gmra.mrb[0].mxu0 %v481
    %v1373 = vpop.f32.mrb[0].mxu0
    %v1374 = vadd.f32 %v1021, %v1373
    %v1375 = vpop.f32.mrb[0].mxu0
    %v1376 = vpop.f32.mrb[0].mxu0
    %v1377 = vadd.f32 %v1024, %v1376
    %v1378 = vpop.f32.mrb[0].mxu0
    %1379 = vmatprep.mubr.bf16.mxu0 %v486
    %1380 = vmatmul.mubr.bf16.gmra.mrb[0].mxu0 %v485
    %v1381 = vpop.f32.mrb[0].mxu0
    %v1382 = vadd.f32 %v1029, %v1381
    %v1383 = vpop.f32.mrb[0].mxu0
    %v1384 = vpop.f32.mrb[0].mxu0
    %v1385 = vadd.f32 %v1032, %v1384
    %v1386 = vpop.f32.mrb[0].mxu0
    %1387 = vmatprep.mubr.bf16.mxu0 %v490
    %1388 = vmatmul.mubr.bf16.gmra.mrb[0].mxu0 %v489
    %v1389 = vpop.f32.mrb[0].mxu0
    %v1390 = vadd.f32 %v1037, %v1389
    %v1391 = vpop.f32.mrb[0].mxu0
    %v1392 = vpop.f32.mrb[0].mxu0
    %v1393 = vadd.f32 %v1040, %v1392
    %v1394 = vpop.f32.mrb[0].mxu0
    %1395 = vmatprep.mubr.bf16.mxu0 %v494
    %1396 = vmatmul.mubr.bf16.gmra.mrb[0].mxu0 %v493
    %v1397 = vpop.f32.mrb[0].mxu0
    %v1398 = vadd.f32 %v1045, %v1397
    %v1399 = vpop.f32.mrb[0].mxu0
    %v1400 = vpop.f32.mrb[0].mxu0
    %v1401 = vadd.f32 %v1048, %v1400
    %v1402 = vpop.f32.mrb[0].mxu0
    %1403 = vmatprep.mubr.bf16.mxu0 %v498
    %1404 = vmatmul.mubr.bf16.gmra.mrb[0].mxu0 %v497
    %v1405 = vpop.f32.mrb[0].mxu0
    %v1406 = vadd.f32 %v1053, %v1405
    %v1407 = vpop.f32.mrb[0].mxu0
    %v1408 = vpop.f32.mrb[0].mxu0
    %v1409 = vadd.f32 %v1056, %v1408
    %v1410 = vpop.f32.mrb[0].mxu0
    %1411 = vmatprep.mubr.bf16.mxu0 %v502
    %1412 = vmatmul.mubr.bf16.gmra.mrb[0].mxu0 %v501
    %v1413 = vpop.f32.mrb[0].mxu0
    %v1414 = vadd.f32 %v1061, %v1413
    %v1415 = vpop.f32.mrb[0].mxu0
    %v1416 = vpop.f32.mrb[0].mxu0
    %v1417 = vadd.f32 %v1064, %v1416
    %v1418 = vpop.f32.mrb[0].mxu0
    %1419 = vmatprep.mubr.bf16.mxu0 %v506
    %1420 = vmatmul.mubr.bf16.gmra.mrb[0].mxu0 %v505
    %v1421 = vpop.f32.mrb[0].mxu0
    %v1422 = vadd.f32 %v1069, %v1421
    %v1423 = vpop.f32.mrb[0].mxu0
    %v1424 = vpop.f32.mrb[0].mxu0
    %v1425 = vadd.f32 %v1072, %v1424
    %v1426 = vpop.f32.mrb[0].mxu0
    %1427 = vmatprep.mubr.bf16.mxu0 %v510
    %1428 = vmatmul.mubr.bf16.gmra.mrb[0].mxu0 %v509
    %v1429 = vpop.f32.mrb[0].mxu0
    %v1430 = vadd.f32 %v1077, %v1429
    %v1431 = vpop.f32.mrb[0].mxu0
    %v1432 = vpop.f32.mrb[0].mxu0
    %v1433 = vadd.f32 %v1080, %v1432
    %v1434 = vpop.f32.mrb[0].mxu0
    %1435 = vmatprep.mubr.bf16.mxu0 %v514
    %1436 = vmatmul.mubr.bf16.gmra.mrb[0].mxu0 %v513
    %v1437 = vpop.f32.mrb[0].mxu0
    %v1438 = vadd.f32 %v1085, %v1437
    %v1439 = vpop.f32.mrb[0].mxu0
    %v1440 = vpop.f32.mrb[0].mxu0
    %v1441 = vadd.f32 %v1088, %v1440
    %v1442 = vpop.f32.mrb[0].mxu0
    %1443 = vmatprep.mubr.bf16.mxu0 %v518
    %1444 = vmatmul.mubr.bf16.gmra.mrb[0].mxu0 %v517
    %v1445 = vpop.f32.mrb[0].mxu0
    %v1446 = vadd.f32 %v1093, %v1445
    %v1447 = vpop.f32.mrb[0].mxu0
    %v1448 = vpop.f32.mrb[0].mxu0
    %v1449 = vadd.f32 %v1096, %v1448
    %v1450 = vpop.f32.mrb[0].mxu0
    %1451 = vmatprep.mubr.bf16.mxu0 %v522
    %1452 = vmatmul.mubr.bf16.gmra.mrb[0].mxu0 %v521
    %v1453 = vpop.f32.mrb[0].mxu0
    %v1454 = vadd.f32 %v1101, %v1453
    %v1455 = vpop.f32.mrb[0].mxu0
    %v1456 = vpop.f32.mrb[0].mxu0
    %v1457 = vadd.f32 %v1104, %v1456
    %v1458 = vpop.f32.mrb[0].mxu0
    %1459 = vmatprep.mubr.bf16.mxu0 %v526
    %1460 = vmatmul.mubr.bf16.gmra.mrb[0].mxu0 %v525
    %v1461 = vpop.f32.mrb[0].mxu0
    %v1462 = vadd.f32 %v1109, %v1461
    %v1463 = vpop.f32.mrb[0].mxu0
    %v1464 = vpop.f32.mrb[0].mxu0
    %v1465 = vadd.f32 %v1112, %v1464
    %v1466 = vpop.f32.mrb[0].mxu0
    %1467 = vmatprep.mubr.bf16.mxu0 %v530
    %1468 = vmatmul.mubr.bf16.gmra.mrb[0].mxu0 %v529
    %v1469 = vpop.f32.mrb[0].mxu0
    %v1470 = vadd.f32 %v1117, %v1469
    %v1471 = vpop.f32.mrb[0].mxu0
    %v1472 = vpop.f32.mrb[0].mxu0
    %v1473 = vadd.f32 %v1120, %v1472
    %v1474 = vpop.f32.mrb[0].mxu0
    %1475 = vmatprep.mubr.bf16.mxu0 %v534
    %1476 = vmatmul.mubr.bf16.gmra.mrb[0].mxu0 %v533
    %v1477 = vpop.f32.mrb[0].mxu0
    %v1478 = vadd.f32 %v1125, %v1477
    %v1479 = vpop.f32.mrb[0].mxu0
    %v1480 = vpop.f32.mrb[0].mxu0
    %v1481 = vadd.f32 %v1128, %v1480
    %v1482 = vpop.f32.mrb[0].mxu0
    %1483 = vmatprep.mubr.bf16.mxu0 %v538
    %1484 = vmatmul.mubr.bf16.gmra.mrb[0].mxu0 %v537
    %v1485 = vpop.f32.mrb[0].mxu0
    %v1486 = vadd.f32 %v1133, %v1485
    %v1487 = vpop.f32.mrb[0].mxu0
    %v1488 = vpop.f32.mrb[0].mxu0
    %v1489 = vadd.f32 %v1136, %v1488
    %v1490 = vpop.f32.mrb[0].mxu0
    %1491 = vmatprep.mubr.bf16.mxu0 %v542
    %1492 = vmatmul.mubr.bf16.gmra.mrb[0].mxu0 %v541
    %v1493 = vpop.f32.mrb[0].mxu0
    %v1494 = vadd.f32 %v1141, %v1493
    %v1495 = vpop.f32.mrb[0].mxu0
    %v1496 = vpop.f32.mrb[0].mxu0
    %v1497 = vadd.f32 %v1144, %v1496
    %v1498 = vpop.f32.mrb[0].mxu0
    %1499 = vmatprep.mubr.bf16.mxu0 %v546
    %1500 = vmatmul.mubr.bf16.gmra.mrb[0].mxu0 %v545
    %v1501 = vpop.f32.mrb[0].mxu0
    %v1502 = vadd.f32 %v1149, %v1501
    %v1503 = vpop.f32.mrb[0].mxu0
    %v1504 = vpop.f32.mrb[0].mxu0
    %v1505 = vadd.f32 %v1152, %v1504
    %v1506 = vpop.f32.mrb[0].mxu0
    %1507 = vmatprep.mubr.bf16.mxu0 %v550
    %1508 = vmatmul.mubr.bf16.gmra.mrb[0].mxu0 %v549
    %v1509 = vpop.f32.mrb[0].mxu0
    %v1510 = vadd.f32 %v1157, %v1509
    %v1511 = vpop.f32.mrb[0].mxu0
    %v1512 = vpop.f32.mrb[0].mxu0
    %v1513 = vadd.f32 %v1160, %v1512
    %v1514 = vpop.f32.mrb[0].mxu0
    %1515 = vmatprep.mubr.bf16.mxu0 %v554
    %1516 = vmatmul.mubr.bf16.gmra.mrb[0].mxu0 %v553
    %v1517 = vpop.f32.mrb[0].mxu0
    %v1518 = vadd.f32 %v1165, %v1517
    %v1519 = vpop.f32.mrb[0].mxu0
    %v1520 = vpop.f32.mrb[0].mxu0
    %v1521 = vadd.f32 %v1168, %v1520
    %v1522 = vpop.f32.mrb[0].mxu0
    %1523 = vdwg.mxu0
    %v1524 = vpack.c.bf16 %v1209, %v1206
    %v1525 = vpack.c.bf16 %v1217, %v1214
    %v1526 = vpack.c.bf16 %v1225, %v1222
    %v1527 = vpack.c.bf16 %v1233, %v1230
    %v1528 = vpack.c.bf16 %v1241, %v1238
    %v1529 = vpack.c.bf16 %v1249, %v1246
    %v1530 = vpack.c.bf16 %v1257, %v1254
    %v1531 = vpack.c.bf16 %v1265, %v1262
    %v1532 = vpack.c.bf16 %v1273, %v1270
    %v1533 = vpack.c.bf16 %v1281, %v1278
    %v1534 = vpack.c.bf16 %v1289, %v1286
    %v1535 = vpack.c.bf16 %v1297, %v1294
    %v1536 = vpack.c.bf16 %v1305, %v1302
    %v1537 = vpack.c.bf16 %v1313, %v1310
    %v1538 = vpack.c.bf16 %v1321, %v1318
    %v1539 = vpack.c.bf16 %v1329, %v1326
    %v1540 = vpack.c.bf16 %v1337, %v1334
    %v1541 = vpack.c.bf16 %v1345, %v1342
    %v1542 = vpack.c.bf16 %v1353, %v1350
    %v1543 = vpack.c.bf16 %v1361, %v1358
    %v1544 = vpack.c.bf16 %v1369, %v1366
    %v1545 = vpack.c.bf16 %v1377, %v1374
    %v1546 = vpack.c.bf16 %v1385, %v1382
    %v1547 = vpack.c.bf16 %v1393, %v1390
    %v1548 = vpack.c.bf16 %v1401, %v1398
    %v1549 = vpack.c.bf16 %v1409, %v1406
    %v1550 = vpack.c.bf16 %v1417, %v1414
    %v1551 = vpack.c.bf16 %v1425, %v1422
    %v1552 = vpack.c.bf16 %v1433, %v1430
    %v1553 = vpack.c.bf16 %v1441, %v1438
    %v1554 = vpack.c.bf16 %v1449, %v1446
    %v1555 = vpack.c.bf16 %v1457, %v1454
    %v1556 = vpack.c.bf16 %v1465, %v1462
    %v1557 = vpack.c.bf16 %v1473, %v1470
    %v1558 = vpack.c.bf16 %v1481, %v1478
    %v1559 = vpack.c.bf16 %v1489, %v1486
    %v1560 = vpack.c.bf16 %v1497, %v1494
    %v1561 = vpack.c.bf16 %v1505, %v1502
    %v1562 = vpack.c.bf16 %v1513, %v1510
    %v1563 = vpack.c.bf16 %v1521, %v1518
    %v1564 = vtanh.bf16.pop %v1524
    %v1565 = vtanh.bf16.pop %v1525
    %v1566 = vtanh.bf16.pop %v1526
    %v1567 = vtanh.bf16.pop %v1527
    %v1568 = vtanh.bf16.pop %v1528
    %v1569 = vtanh.bf16.pop %v1529
    %v1570 = vtanh.bf16.pop %v1530
    %v1571 = vtanh.bf16.pop %v1531
    %v1572 = vtanh.bf16.pop %v1532
    %v1573 = vtanh.bf16.pop %v1533
    %v1574 = vtanh.bf16.pop %v1534
    %v1575 = vtanh.bf16.pop %v1535
    %v1576 = vtanh.bf16.pop %v1536
    %v1577 = vtanh.bf16.pop %v1537
    %v1578 = vtanh.bf16.pop %v1538
    %v1579 = vtanh.bf16.pop %v1539
    %v1580 = vtanh.bf16.pop %v1540
    %v1581 = vtanh.bf16.pop %v1541
    %v1582 = vtanh.bf16.pop %v1542
    %v1583 = vtanh.bf16.pop %v1543
    %v1584 = vtanh.bf16.pop %v1544
    %v1585 = vtanh.bf16.pop %v1545
    %v1586 = vtanh.bf16.pop %v1546
    %v1587 = vtanh.bf16.pop %v1547
    %v1588 = vtanh.bf16.pop %v1548
    %v1589 = vtanh.bf16.pop %v1549
    %v1590 = vtanh.bf16.pop %v1550
    %v1591 = vtanh.bf16.pop %v1551
    %v1592 = vtanh.bf16.pop %v1552
    %v1593 = vtanh.bf16.pop %v1553
    %v1594 = vtanh.bf16.pop %v1554
    %v1595 = vtanh.bf16.pop %v1555
    %v1596 = vtanh.bf16.pop %v1556
    %v1597 = vtanh.bf16.pop %v1557
    %v1598 = vtanh.bf16.pop %v1558
    %v1599 = vtanh.bf16.pop %v1559
    %v1600 = vtanh.bf16.pop %v1560
    %v1601 = vtanh.bf16.pop %v1561
    %v1602 = vtanh.bf16.pop %v1562
    %v1603 = vtanh.bf16.pop %v1563
    %v1604 = vld [vmem:[#allocation9] sm:$0x1]
    %v1605 = vld [vmem:[#allocation2] sm:$0x1]
    %1607 = vset.pattern.permute.xlu0 0
    %1608 = vperm.xlu0 %1607, %v1605
    %v1609 = vpop.permute.xlu0 %1608
    %v1611 = vlaneseq
    %v1612 = vshrl.u32 %v1611, 7
    %v1613 = vsub.s32 0, %v1612
    %v1614 = vrot.slane %v1609, %v1613
    %1615 = vmatprep.subr.bf16.mxu0 0
    %1616 = vmatpush1.bf16.xpose.msra.mxu0 %v1564
    %1617 = vmatprep.subr.bf16.mxu0 0
    %1618 = vmatpush1.bf16.xpose.msra.mxu0 %v1565
    %1619 = vmatprep.subr.bf16.mxu0 0
    %1620 = vmatpush1.bf16.xpose.msra.mxu0 %v1566
    %1621 = vmatprep.subr.bf16.mxu0 0
    %1622 = vmatpush1.bf16.xpose.msra.mxu0 %v1567
    %1623 = vmatprep.subr.bf16.mxu0 0
    %1624 = vmatpush1.bf16.xpose.msra.mxu0 %v1568
    %1625 = vmatprep.subr.bf16.mxu0 0
    %1626 = vmatpush1.bf16.xpose.msra.mxu0 %v1569
    %1627 = vmatprep.subr.bf16.mxu0 0
    %1628 = vmatpush1.bf16.xpose.msra.mxu0 %v1570
    %1629 = vmatprep.subr.bf16.mxu0 0
    %1630 = vmatpush1.bf16.xpose.msra.mxu0 %v1571
    %1631 = vmatprep.subr.bf16.mxu0 0
    %1632 = vmatpush1.bf16.xpose.msra.mxu0 %v1572
    %1633 = vmatprep.subr.bf16.mxu0 0
    %1634 = vmatpush1.bf16.xpose.msra.mxu0 %v1573
    %1635 = vmatprep.subr.bf16.mxu0 0
    %1636 = vmatpush1.bf16.xpose.msra.mxu0 %v1574
    %1637 = vmatprep.subr.bf16.mxu0 0
    %1638 = vmatpush1.bf16.xpose.msra.mxu0 %v1575
    %1639 = vmatprep.subr.bf16.mxu0 0
    %1640 = vmatpush1.bf16.xpose.msra.mxu0 %v1576
    %1641 = vmatprep.subr.bf16.mxu0 0
    %1642 = vmatpush1.bf16.xpose.msra.mxu0 %v1577
    %1643 = vmatprep.subr.bf16.mxu0 0
    %1644 = vmatpush1.bf16.xpose.msra.mxu0 %v1578
    %1645 = vmatprep.subr.bf16.mxu0 0
    %1646 = vmatpush1.bf16.xpose.msra.mxu0 %v1579
    %1647 = vmatprep.mubr.bf16.mxu0 0
    %1648 = vmatmul.mubr.bf16.gmra.mrb[0].mxu0 %v1604
    %v1649 = vpop.f32.mrb[0].mxu0
    %v1650 = vadd.f32 %v1614, %v1649
    %v1651 = vpop.f32.mrb[0].mxu0
    %v1652 = vadd.f32 %v1614, %v1651
    %v1653 = vpop.f32.mrb[0].mxu0
    %v1654 = vpop.f32.mrb[0].mxu0
    %1655 = vdwg.mxu0
    %1656 = vmatprep.subr.bf16.mxu0 0
    %1657 = vmatpush1.bf16.xpose.msra.mxu0 %v1580
    %1658 = vmatprep.subr.bf16.mxu0 0
    %1659 = vmatpush1.bf16.xpose.msra.mxu0 %v1581
    %1660 = vmatprep.subr.bf16.mxu0 0
    %1661 = vmatpush1.bf16.xpose.msra.mxu0 %v1582
    %1662 = vmatprep.subr.bf16.mxu0 0
    %1663 = vmatpush1.bf16.xpose.msra.mxu0 %v1583
    %1664 = vmatprep.subr.bf16.mxu0 0
    %1665 = vmatpush1.bf16.xpose.msra.mxu0 %v1584
    %1666 = vmatprep.subr.bf16.mxu0 0
    %1667 = vmatpush1.bf16.xpose.msra.mxu0 %v1585
    %1668 = vmatprep.subr.bf16.mxu0 0
    %1669 = vmatpush1.bf16.xpose.msra.mxu0 %v1586
    %1670 = vmatprep.subr.bf16.mxu0 0
    %1671 = vmatpush1.bf16.xpose.msra.mxu0 %v1587
    %1672 = vmatprep.subr.bf16.mxu0 0
    %1673 = vmatpush1.bf16.xpose.msra.mxu0 %v1588
    %1674 = vmatprep.subr.bf16.mxu0 0
    %1675 = vmatpush1.bf16.xpose.msra.mxu0 %v1589
    %1676 = vmatprep.subr.bf16.mxu0 0
    %1677 = vmatpush1.bf16.xpose.msra.mxu0 %v1590
    %1678 = vmatprep.subr.bf16.mxu0 0
    %1679 = vmatpush1.bf16.xpose.msra.mxu0 %v1591
    %1680 = vmatprep.subr.bf16.mxu0 0
    %1681 = vmatpush1.bf16.xpose.msra.mxu0 %v1592
    %1682 = vmatprep.subr.bf16.mxu0 0
    %1683 = vmatpush1.bf16.xpose.msra.mxu0 %v1593
    %1684 = vmatprep.subr.bf16.mxu0 0
    %1685 = vmatpush1.bf16.xpose.msra.mxu0 %v1594
    %1686 = vmatprep.subr.bf16.mxu0 0
    %1687 = vmatpush1.bf16.xpose.msra.mxu0 %v1595
    %1688 = vmatprep.mubr.bf16.mxu0 0
    %1689 = vmatmul.mubr.bf16.gmra.mrb[0].mxu0 %v1604
    %v1690 = vpop.f32.mrb[0].mxu0
    %v1691 = vadd.f32 %v1614, %v1690
    %v1692 = vpop.f32.mrb[0].mxu0
    %v1693 = vadd.f32 %v1614, %v1692
    %v1694 = vpop.f32.mrb[0].mxu0
    %v1695 = vpop.f32.mrb[0].mxu0
    %1696 = vdwg.mxu0
    %1697 = vmatprep.subr.bf16.mxu0 0
    %1698 = vmatpush1.bf16.xpose.msra.mxu0 %v1596
    %1699 = vmatprep.subr.bf16.mxu0 0
    %1700 = vmatpush1.bf16.xpose.msra.mxu0 %v1597
    %1701 = vmatprep.subr.bf16.mxu0 0
    %1702 = vmatpush1.bf16.xpose.msra.mxu0 %v1598
    %1703 = vmatprep.subr.bf16.mxu0 0
    %1704 = vmatpush1.bf16.xpose.msra.mxu0 %v1599
    %1705 = vmatprep.subr.bf16.mxu0 0
    %1706 = vmatpush1.bf16.xpose.msra.mxu0 %v1600
    %1707 = vmatprep.subr.bf16.mxu0 0
    %1708 = vmatpush1.bf16.xpose.msra.mxu0 %v1601
    %1709 = vmatprep.subr.bf16.mxu0 0
    %1710 = vmatpush1.bf16.xpose.msra.mxu0 %v1602
    %1711 = vmatprep.subr.bf16.mxu0 0
    %1712 = vmatpush1.bf16.xpose.msra.mxu0 %v1603
    %1713 = vmatprep.subr.bf16.mxu0 0
    %1714 = vmatpush1.bf16.xpose.msra.mxu0 0
    %1715 = vmatprep.subr.bf16.mxu0 0
    %1716 = vmatpush1.bf16.xpose.msra.mxu0 0
    %1717 = vmatprep.subr.bf16.mxu0 0
    %1718 = vmatpush1.bf16.xpose.msra.mxu0 0
    %1719 = vmatprep.subr.bf16.mxu0 0
    %1720 = vmatpush1.bf16.xpose.msra.mxu0 0
    %1721 = vmatprep.subr.bf16.mxu0 0
    %1722 = vmatpush1.bf16.xpose.msra.mxu0 0
    %1723 = vmatprep.subr.bf16.mxu0 0
    %1724 = vmatpush1.bf16.xpose.msra.mxu0 0
    %1725 = vmatprep.subr.bf16.mxu0 0
    %1726 = vmatpush1.bf16.xpose.msra.mxu0 0
    %1727 = vmatprep.subr.bf16.mxu0 0
    %1728 = vmatpush1.bf16.xpose.msra.mxu0 0
    %1729 = vmatprep.mubr.bf16.mxu0 0
    %1730 = vmatmul.mubr.bf16.gmra.mrb[0].mxu0 %v1604
    %v1731 = vpop.f32.mrb[0].mxu0
    %v1732 = vadd.f32 %v1614, %v1731
    %v1733 = vpop.f32.mrb[0].mxu0
    %v1734 = vpop.f32.mrb[0].mxu0
    %v1735 = vpop.f32.mrb[0].mxu0
    %1736 = vdwg.mxu0
    %v1742 = vcombine.low %v1650, %v1652
    %v1743 = vcombine.low %v1691, %v1693
    %v1745 = vunpack.c.l.s4 1966171168
    %v1746 = vunpack.c.0.s8 %v1745
    %v1747 = vlaneseq
    %v1748 = vshrl.u32 %v1747, 7
    %v1749 = vsub.s32 %v1746, %v1748
    %v1750 = vrot.slane %v1742, %v1749
    %v1752 = vunpack.c.l.s4 1966171168
    %v1753 = vunpack.c.0.s8 %v1752
    %v1754 = vlaneseq
    %v1755 = vshrl.u32 %v1754, 7
    %v1756 = vsub.s32 %v1753, %v1755
    %v1757 = vrot.slane %v1743, %v1756
    %v1759 = vunpack.c.l.s4 1966171168
    %v1760 = vunpack.c.0.s8 %v1759
    %v1761 = vlaneseq
    %v1762 = vshrl.u32 %v1761, 7
    %v1763 = vsub.s32 %v1760, %v1762
    %v1764 = vrot.slane %v1732, %v1763
    %v1765 = vcombine.low %v1750, %v1757
    %v1767 = vunpack.c.l.s4 1966171168
    %v1768 = vunpack.c.0.s8 %v1767
    %v1769 = vlaneseq
    %v1770 = vshrl.u32 %v1769, 7
    %v1771 = vsub.s32 %v1768, %v1770
    %v1772 = vrot.slane %v1765, %v1771
    %v1774 = vunpack.c.l.s4 1966171168
    %v1775 = vunpack.c.0.s8 %v1774
    %v1776 = vlaneseq
    %v1777 = vshrl.u32 %v1776, 7
    %v1778 = vsub.s32 %v1775, %v1777
    %v1779 = vrot.slane %v1764, %v1778
    %v1780 = vcombine.low %v1772, %v1779
    %v1782 = vlaneseq
    %vm1783 = vcmp.ge.s32.totalorder %v1782, 0
    %vm1784 = vcmp.lt.s32.totalorder %v1782, 640
    %vm1785 = vmand %vm1783, %vm1784
    %1786 = vst.msk [vmem:[#allocation11] sm:$0x1f] %vm1785, %v1780
    // Predicated region
    $region38: #{tpu_custom_call.1} parent=1 // pred_check
      _
    $region39: #{tpu_custom_call.1} parent=1 // pred_check_branch
      %1788 = sbr.rel (0) target = $region41
    $region40: #{tpu_custom_call.1} parent=1 // pred_region
      %s1790 = ssub.s32 80, 80
      %1791 = vsyncadd [#allocation5], %s1790
      %s1793 = sshll.u32 [#allocation11], 4
      %s1794 = int_to_ptr.vmem [resolvable:$true] %s1793
      %1796 = dma.vmem_to_hbm [thread:$0]  %s1794, 80, %s5, [#allocation5]
    $region41: #{tpu_custom_call.1} parent=1 // pred_fallthru
      _
    // Predicated region
    $region42: #{tpu_custom_call.1} parent=1 // pred_check
      _
    $region43: #{tpu_custom_call.1} parent=1 // pred_check_branch
      %1798 = sbr.rel (0) target = $region45
    $region44: #{tpu_custom_call.1} parent=1 // pred_region
      %1799 = dma.done [#allocation5], 80
    $region45: #{tpu_custom_call.1} parent=1 // pred_fallthru
      _
    %1800 = vsyncpa [#allocation4], 1
    %1801 = vsyncpa [#allocation7], 1
    %1802 = vsyncpa [#allocation10], 1
    %1803 = vsyncpa [#allocation5], 1

</llo_original>
